<compile_context>
chip_gen: v7x
topology: tpu7x:2x2x1
jax: 0.10.0
libtpu: 0.0.40
codegen_flags: <defaults>
</compile_context>

<pallas_src>
import functools

import jax
import jax.numpy as jnp
from jax.experimental import pallas as pl
from jax.experimental.pallas import tpu as pltpu

WORD_EMBED_DIM = 768      # fixed by the module (BERT hidden size)
LANE = 128                # TPU lane width  (last-dim tile)
SUBLANE = 8               # TPU sublane width (second-to-last-dim tile)


def _round_up(x, m):
    return (x + m - 1) // m * m


# ------------------------------ fused kernel --------------------------------

def _decoder_step_body(tok_ref,      # SMEM  [B]                int32 token ids
                       embed_hbm,    # HBM   [vocab, E] f32     embedding table
                       h0_ref,       # VMEM  [L, Bp, Hs] f32
                       c0_ref,       # VMEM  [L, Bp, Hs] f32
                       w0_ref,       # VMEM  [E+Hs, G4]  bf16   layer-0 [Wih; Whh]
                       wr_ref,       # VMEM  [L-1, Kr, G4] bf16 (None if L == 1)
                       b_ref,        # VMEM  [L, 1, G4]  f32    b_ih + b_hh
                       fcw_ref,      # VMEM  [H, Op]     bf16
                       fcb_ref,      # VMEM  [1, Op]     f32
                       pred_ref,     # VMEM out [Bp, Op] f32
                       hn_ref,       # VMEM out [L, Bp, Hs] f32  (aliases h0)
                       cn_ref,       # VMEM out [L, Bp, Hs] f32  (aliases c0)
                       xh0,          # VMEM scratch [Bp, E+Hs] f32  layer-0 [x ‖ h]
                       xh1,          # VMEM scratch [Bp, Kr]   f32  (None if L == 1)
                       sem,          # DMA semaphore (1,)
                       *, hid_dim, n_layers):
    batch = tok_ref.shape[0]
    _, b_pad, Hs = hn_ref.shape
    H = hid_dim
    E = WORD_EMBED_DIM

    # -- 1. kick off the embedding-row gathers: HBM rows land directly in
    #       cols [0, E) of the layer-0 [x ‖ h] operand (no staging buffer, no
    #       VMEM->VMEM copy).  All rows funnel through ONE DMA semaphore, so the
    #       waits below drain a single aggregate completion count.
    copies = []
    for bi in range(batch):                       # batch is static -> unrolled
        cp = pltpu.make_async_copy(
            embed_hbm.at[pl.ds(tok_ref[bi], 1), :],
            xh0.at[pl.ds(bi, 1), pl.ds(0, E)],
            sem.at[0])
        cp.start()
        copies.append(cp)

    # -- 2. hide the gather latency behind every piece of setup work ----------
    if batch < b_pad:                             # deterministic (discarded) rows
        xh0[pl.ds(batch, b_pad - batch), pl.ds(0, E)] = jnp.zeros(
            (b_pad - batch, E), jnp.float32)
    # cols [E, E+Hs): layer-0 h state (its pad lanes are maintained as zeros)
    xh0[:, pl.ds(E, Hs)] = h0_ref[0]
    if n_layers > 1:
        Kr = xh1.shape[-1]
        if 2 * H < Kr:                            # pad cols hit zero weight rows
            xh1[:, pl.ds(2 * H, Kr - 2 * H)] = jnp.zeros(
                (b_pad, Kr - 2 * H), jnp.float32)

    lane_zeros = (jnp.zeros((b_pad, Hs - H), jnp.float32) if H < Hs else None)

    def store_state(ref, layer, val):
        # keep pad lanes zero so the padded state can be carried across decode
        # steps (input_output_aliases) without ever re-padding
        ref[layer, :, pl.ds(0, H)] = val
        if lane_zeros is not None:
            ref[layer, :, pl.ds(H, Hs - H)] = lane_zeros

    def lstm_cell(xh_f32, w_bf16, bias_f32, c_prev_f32):
        # all four (tightly packed) gates in ONE bf16 MXU matmul, f32 accumulate;
        # gate nonlinearities and the c/h update stay in f32 (v5e: no bf16 VPU).
        gates = jnp.dot(xh_f32.astype(jnp.bfloat16), w_bf16,
                        preferred_element_type=jnp.float32) + bias_f32
        i = jax.nn.sigmoid(gates[:, 0 * H:1 * H])
        f = jax.nn.sigmoid(gates[:, 1 * H:2 * H])
        g = jnp.tanh(gates[:, 2 * H:3 * H])
        o = jax.nn.sigmoid(gates[:, 3 * H:4 * H])
        c_new = f * c_prev_f32 + i * g
        h_new = o * jnp.tanh(c_new)
        return h_new, c_new

    # -- 3. drain the gather completions, then run layer 0 ---------------------
    for cp in copies:
        cp.wait()
    h_new, c_new = lstm_cell(xh0[...], w0_ref[...], b_ref[0], c0_ref[0][:, :H])
    store_state(hn_ref, 0, h_new)
    store_state(cn_ref, 0, c_new)

    # -- 4. layers 1..L-1 (static unroll; input is the layer below's h) --------
    for l in range(1, n_layers):
        xh1[:, pl.ds(0, H)] = h_new
        xh1[:, pl.ds(H, H)] = h0_ref[l][:, :H]
        h_new, c_new = lstm_cell(xh1[...], wr_ref[l - 1], b_ref[l],
                                 c0_ref[l][:, :H])
        store_state(hn_ref, l, h_new)
        store_state(cn_ref, l, c_new)

    # -- 5. fc_out --------------------------------------------------------------
    pred_ref[...] = (jnp.dot(h_new.astype(jnp.bfloat16), fcw_ref[...],
                             preferred_element_type=jnp.float32)
                     + fcb_ref[...])


# -------------------------------- wrappers -----------------------------------

def pad_state(x):
    """[L, B, H] -> zero-padded persistent [L, Bp, Hs] layout.  In an
    autoregressive loop this is done ONCE before the loop, not per step."""
    n_layers, b, h = x.shape
    return jnp.pad(x.astype(jnp.float32),
                   ((0, 0), (0, _round_up(b, SUBLANE) - b),
                    (0, _round_up(h, LANE) - h)))


def step_decoder_padded_step(packed, bert_tokens_t, h0p, c0p, *,
                             n_layers, hid_dim, output_dim):
    """One fused decode step entirely in the padded state layout.  hn/cn alias
    h0/c0's HBM buffers (input_output_aliases), so state never round-trips
    through extra pad/slice ops between steps."""
    b_pad, Hs = h0p.shape[1], h0p.shape[2]
    E = WORD_EMBED_DIM
    K0 = E + Hs
    Kr = _round_up(2 * hid_dim, LANE)
    Op = _round_up(output_dim, LANE)

    vmem = pl.BlockSpec(memory_space=pltpu.MemorySpace.VMEM)
    smem = pl.BlockSpec(memory_space=pltpu.MemorySpace.SMEM)
    hbm = pl.BlockSpec(memory_space=pl.ANY)      # embedding table stays in HBM

    if n_layers > 1:
        def kernel(tok, emb, h0, c0, w0, wr, b, fcw, fcb,
                   pred, hn, cn, xh0, xh1, sem):
            _decoder_step_body(tok, emb, h0, c0, w0, wr, b, fcw, fcb,
                               pred, hn, cn, xh0, xh1, sem,
                               hid_dim=hid_dim, n_layers=n_layers)
        weight_ops = (packed["w0"], packed["w_rest"], packed["b"],
                      packed["fc_w"], packed["fc_b"])
        scratch = [pltpu.VMEM((b_pad, K0), jnp.float32),
                   pltpu.VMEM((b_pad, Kr), jnp.float32),
                   pltpu.SemaphoreType.DMA((1,))]
    else:
        # n_layers == 1: the dummy w_rest operand (its DMA) and xh1 are skipped.
        def kernel(tok, emb, h0, c0, w0, b, fcw, fcb,
                   pred, hn, cn, xh0, sem):
            _decoder_step_body(tok, emb, h0, c0, w0, None, b, fcw, fcb,
                               pred, hn, cn, xh0, None, sem,
                               hid_dim=hid_dim, n_layers=n_layers)
        weight_ops = (packed["w0"], packed["b"], packed["fc_w"], packed["fc_b"])
        scratch = [pltpu.VMEM((b_pad, K0), jnp.float32),
                   pltpu.SemaphoreType.DMA((1,))]

    # TODO(synk): for hid_dim >~ 512 on v7x (64 MiB VMEM) switch the weight
    # operands to per-layer HBM streaming (pl.ANY + double-buffered DMA), and for
    # large serving batch add a batch-block grid with dimension_semantics=
    # ("parallel",) so both v7x TensorCores are used.  Not worth it at these sizes.
    pred_pad, hnp, cnp = pl.pallas_call(
        kernel,
        out_shape=(jax.ShapeDtypeStruct((b_pad, Op), jnp.float32),
                   jax.ShapeDtypeStruct((n_layers, b_pad, Hs), jnp.float32),
                   jax.ShapeDtypeStruct((n_layers, b_pad, Hs), jnp.float32)),
        in_specs=[smem, hbm, vmem, vmem] + [vmem] * len(weight_ops),
        out_specs=(vmem, vmem, vmem),
        scratch_shapes=scratch,
        # hn <- h0's buffer, cn <- c0's buffer: persistent padded state.
        input_output_aliases={2: 1, 3: 2},
        compiler_params=pltpu.CompilerParams(
            vmem_limit_bytes=32 * 1024 * 1024),
    )(bert_tokens_t.astype(jnp.int32), packed["bert_embed"], h0p, c0p,
      *weight_ops)
    return pred_pad, hnp, cnp


def step_decoder_forward(packed, inp, bert_tokens_t, h0, c0, *,
                         n_layers, hid_dim, output_dim):
    """Mirrors StepDecoder.forward (dropout is defined there but never applied)."""
    del inp  # unsqueezed in the PyTorch code but never used afterwards
    batch = bert_tokens_t.shape[0]
    pred_pad, hnp, cnp = step_decoder_padded_step(
        packed, bert_tokens_t, pad_state(h0), pad_state(c0),
        n_layers=n_layers, hid_dim=hid_dim, output_dim=output_dim)
    return (pred_pad[:batch, :output_dim],
            hnp[:, :batch, :hid_dim],
            cnp[:, :batch, :hid_dim])


# ---------------------- one-time parameter re-packing -----------------------

def pack_params(raw, *, n_layers, hid_dim, output_dim):
    """Repack raw (pre-transposed [in, out]) parameters into the tightly packed,
    bf16 layout the fused kernel streams.  Gate order i|f|g|o is kept contiguous
    in columns [0, 4H); all padding is zero, so results are exact w.r.t. the
    bf16-stored weights."""
    H = hid_dim
    Hs = _round_up(H, LANE)
    G4 = _round_up(4 * H, LANE)
    Kr = _round_up(2 * H, LANE)
    Op = _round_up(output_dim, LANE)
    E = WORD_EMBED_DIM
    wdt = jnp.bfloat16

    # layer 0: rows [0, E) multiply x; rows [E, E+H) multiply h0[0].
    w0 = jnp.zeros((E + Hs, G4), wdt)
    w0 = w0.at[:E, :4 * H].set(raw["w_ih"][0].astype(wdt))
    w0 = w0.at[E:E + H, :4 * H].set(raw["w_hh"][0].astype(wdt))

    packed = {
        # TODO(synk): a bf16 embedding table would halve gather bytes but needs
        # the u32 pair-packing trick for single-row DMA scatter; f32 rows are
        # ~6 KB/step here, negligible vs the (now bf16) weight stream.
        "bert_embed": raw["bert_embed"].astype(jnp.float32),
        "w0": w0,
        "fc_w": jnp.zeros((H, Op), wdt).at[:, :output_dim].set(
            raw["fc_w"].astype(wdt)),
        "fc_b": jnp.zeros((1, Op), jnp.float32).at[0, :output_dim].set(
            raw["fc_b"]),
    }

    b = jnp.zeros((n_layers, 1, G4), jnp.float32)
    for l in range(n_layers):
        b = b.at[l, 0, :4 * H].set(raw["b"][l])
    packed["b"] = b

    if n_layers > 1:
        # layers >= 1: rows [0, H) multiply lower layer's h; rows [H, 2H) h0[l].
        w_rest = jnp.zeros((n_layers - 1, Kr, G4), wdt)
        for l in range(1, n_layers):
            w_rest = w_rest.at[l - 1, :H, :4 * H].set(raw["w_ih"][l].astype(wdt))
            w_rest = w_rest.at[l - 1, H:2 * H, :4 * H].set(
                raw["w_hh"][l].astype(wdt))
        packed["w_rest"] = w_rest
    return packed


# --------------------------- pure-JAX reference -----------------------------

def _reference(raw, bert_tokens_t, h0, c0, n_layers, *, emulate_bf16=True):
    """f32 HIGHEST-precision reference.  With emulate_bf16=True the matmul
    operands pass through bf16 exactly like the kernel's MXU path (bf16 operands,
    f32 accumulate), isolating layout/packing correctness from the deliberate
    bf16 weight-storage choice."""
    hi = jax.lax.Precision.HIGHEST
    bf = ((lambda v: v.astype(jnp.bfloat16).astype(jnp.float32))
          if emulate_bf16 else (lambda v: v))
    H = h0.shape[-1]
    x = jnp.take(raw["bert_embed"], bert_tokens_t, axis=0)
    hs, cs = [], []
    for l in range(n_layers):
        gates = (jnp.dot(bf(x), bf(raw["w_ih"][l]), precision=hi)
                 + jnp.dot(bf(h0[l]), bf(raw["w_hh"][l]), precision=hi)
                 + raw["b"][l])
        i = jax.nn.sigmoid(gates[:, 0 * H:1 * H])
        f = jax.nn.sigmoid(gates[:, 1 * H:2 * H])
        g = jnp.tanh(gates[:, 2 * H:3 * H])
        o = jax.nn.sigmoid(gates[:, 3 * H:4 * H])
        c_new = f * c0[l] + i * g
        h_new = o * jnp.tanh(c_new)
        hs.append(h_new)
        cs.append(c_new)
        x = h_new
    pred = jnp.dot(bf(x), bf(raw["fc_w"]), precision=hi) + raw["fc_b"]
    return pred, jnp.stack(hs), jnp.stack(cs)


# ----------------------------------- main ------------------------------------

if __name__ == "__main__":
    batch = 2
    hid_dim = 32
    n_layers = 2
    output_dim = 16
    vocab = 50

    key = jax.random.PRNGKey(0)
    ks = jax.random.split(key, 16)
    scale = 1.0 / jnp.sqrt(hid_dim)

    # Deterministic synthetic parameters (pre-transposed: [in_features, out_features]).
    w_ih, w_hh, bias = [], [], []
    for l in range(n_layers):
        in_dim = WORD_EMBED_DIM if l == 0 else hid_dim
        w_ih.append(jax.random.uniform(ks[l], (in_dim, 4 * hid_dim),
                                       minval=-scale, maxval=scale, dtype=jnp.float32))
        w_hh.append(jax.random.uniform(ks[4 + l], (hid_dim, 4 * hid_dim),
                                       minval=-scale, maxval=scale, dtype=jnp.float32))
        # b_ih + b_hh folded into one bias per layer.
        bias.append(jax.random.uniform(ks[8 + l], (4 * hid_dim,),
                                       minval=-scale, maxval=scale, dtype=jnp.float32))

    # TODO(synk): external pretrained BERT encoder replaced by a deterministic
    # embedding-table lookup producing the same [1, batch, 768] activation shape.
    raw = {
        "bert_embed": jax.random.normal(ks[12], (vocab, WORD_EMBED_DIM),
                                        dtype=jnp.float32) * 0.02,
        "w_ih": w_ih, "w_hh": w_hh, "b": bias,
        "fc_w": jax.random.uniform(ks[13], (hid_dim, output_dim),
                                   minval=-scale, maxval=scale, dtype=jnp.float32),
        "fc_b": jax.random.uniform(ks[14], (output_dim,),
                                   minval=-scale, maxval=scale, dtype=jnp.float32),
    }
    packed = pack_params(raw, n_layers=n_layers, hid_dim=hid_dim,
                         output_dim=output_dim)

    # Inputs.
    inp = jax.random.randint(ks[15], (batch,), 0, output_dim, dtype=jnp.int32)
    bert_tokens_t = jax.random.randint(ks[3], (batch,), 0, vocab, dtype=jnp.int32)
    h0 = jax.random.normal(ks[7], (n_layers, batch, hid_dim), dtype=jnp.float32)
    c0 = jax.random.normal(ks[11], (n_layers, batch, hid_dim), dtype=jnp.float32)

    fwd = jax.jit(functools.partial(step_decoder_forward, n_layers=n_layers,
                                    hid_dim=hid_dim, output_dim=output_dim))
    prediction, hn, cn = fwd(packed, inp, bert_tokens_t, h0, c0)
    jax.block_until_ready((prediction, hn, cn))

    assert prediction.shape == (batch, output_dim)
    assert hn.shape == (n_layers, batch, hid_dim) and cn.shape == hn.shape

    # Tight check: kernel vs a reference that uses the same bf16 matmul operands
    # (verifies packing / gather / recurrence exactly).
    ref_pred, ref_hn, ref_cn = _reference(raw, bert_tokens_t, h0, c0, n_layers)
    assert jnp.allclose(prediction, ref_pred, atol=2e-3, rtol=2e-3)
    assert jnp.allclose(hn, ref_hn, atol=2e-3, rtol=2e-3)
    assert jnp.allclose(cn, ref_cn, atol=2e-3, rtol=2e-3)

    # Loose sanity check vs the original full-f32 module math (bf16 weight
    # storage keeps the step within ~1e-3 of it at these sizes).
    f32_pred, f32_hn, f32_cn = _reference(raw, bert_tokens_t, h0, c0, n_layers,
                                          emulate_bf16=False)
    assert jnp.allclose(prediction, f32_pred, atol=5e-2, rtol=5e-2)
    assert jnp.allclose(hn, f32_hn, atol=5e-2, rtol=5e-2)
    assert jnp.allclose(cn, f32_cn, atol=5e-2, rtol=5e-2)

    print("KERNEL_OK")
</pallas_src>

<mosaic_0001>
module attributes {stable_mosaic.version = 11 : i64} {
  func.func @kernel(%arg0: memref<2xi32, #tpu.memory_space<smem>>, %arg1: memref<50x768xf32, #tpu.memory_space<any>>, %arg2: memref<2x8x128xf32, #tpu.memory_space<vmem>>, %arg3: memref<2x8x128xf32, #tpu.memory_space<vmem>>, %arg4: memref<896x128xbf16, #tpu.memory_space<vmem>>, %arg5: memref<1x128x128xbf16, #tpu.memory_space<vmem>>, %arg6: memref<2x1x128xf32, #tpu.memory_space<vmem>>, %arg7: memref<32x128xbf16, #tpu.memory_space<vmem>>, %arg8: memref<1x128xf32, #tpu.memory_space<vmem>>, %arg9: memref<8x128xf32, #tpu.memory_space<vmem>>, %arg10: memref<2x8x128xf32, #tpu.memory_space<vmem>>, %arg11: memref<2x8x128xf32, #tpu.memory_space<vmem>>, %arg12: memref<8x896xf32, #tpu.memory_space<vmem>>, %arg13: memref<8x128xf32, #tpu.memory_space<vmem>>, %arg14: memref<1x!tpu.dma_semaphore, #tpu.memory_space<semaphore_mem>>) attributes {dimension_semantics = [], scalar_prefetch = 0 : i64, scratch_operands = 3 : i64, tpu.core_type = #tpu.core_type<tc>} {
    %c0 = arith.constant 0 : index
    %0 = memref.load %arg0[%c0] : memref<2xi32, #tpu.memory_space<smem>>
    %c0_i32 = arith.constant 0 : i32
    %c0_i32_0 = arith.constant 0 : i32
    %1 = tpu.memref_slice %arg1[%0, %c0_i32_0] : memref<50x768xf32, #tpu.memory_space<any>> -> memref<1x768xf32, #tpu.memory_space<any>>
    %c0_i32_1 = arith.constant 0 : i32
    %c0_i32_2 = arith.constant 0 : i32
    %2 = tpu.memref_slice %arg12[%c0_i32_1, %c0_i32_2] : memref<8x896xf32, #tpu.memory_space<vmem>> -> memref<1x768xf32, #tpu.memory_space<vmem>>
    %3 = tpu.memref_slice %arg14[%c0_i32] : memref<1x!tpu.dma_semaphore, #tpu.memory_space<semaphore_mem>> -> memref<1x!tpu.dma_semaphore, #tpu.memory_space<semaphore_mem>>
    %4 = tpu.memref_squeeze %3 : memref<1x!tpu.dma_semaphore, #tpu.memory_space<semaphore_mem>> -> memref<!tpu.dma_semaphore, #tpu.memory_space<semaphore_mem>>
    tpu.enqueue_dma source(%1 : memref<1x768xf32, #tpu.memory_space<any>>) target(%2 : memref<1x768xf32, #tpu.memory_space<vmem>>) target_semaphore(%4 : memref<!tpu.dma_semaphore, #tpu.memory_space<semaphore_mem>>)
    %c1 = arith.constant 1 : index
    %5 = memref.load %arg0[%c1] : memref<2xi32, #tpu.memory_space<smem>>
    %c0_i32_3 = arith.constant 0 : i32
    %c0_i32_4 = arith.constant 0 : i32
    %6 = tpu.memref_slice %arg1[%5, %c0_i32_4] : memref<50x768xf32, #tpu.memory_space<any>> -> memref<1x768xf32, #tpu.memory_space<any>>
    %c1_i32 = arith.constant 1 : i32
    %c0_i32_5 = arith.constant 0 : i32
    %7 = tpu.memref_slice %arg12[%c1_i32, %c0_i32_5] : memref<8x896xf32, #tpu.memory_space<vmem>> -> memref<1x768xf32, #tpu.memory_space<vmem>>
    %8 = tpu.memref_slice %arg14[%c0_i32_3] : memref<1x!tpu.dma_semaphore, #tpu.memory_space<semaphore_mem>> -> memref<1x!tpu.dma_semaphore, #tpu.memory_space<semaphore_mem>>
    %9 = tpu.memref_squeeze %8 : memref<1x!tpu.dma_semaphore, #tpu.memory_space<semaphore_mem>> -> memref<!tpu.dma_semaphore, #tpu.memory_space<semaphore_mem>>
    tpu.enqueue_dma source(%6 : memref<1x768xf32, #tpu.memory_space<any>>) target(%7 : memref<1x768xf32, #tpu.memory_space<vmem>>) target_semaphore(%9 : memref<!tpu.dma_semaphore, #tpu.memory_space<semaphore_mem>>)
    %cst = arith.constant 0.000000e+00 : f32
    %10 = vector.broadcast %cst : f32 to vector<6x768xf32>
    %c2 = arith.constant 2 : index
    %c0_6 = arith.constant 0 : index
    %11 = vector.load %arg12[%c2, %c0_6] : memref<8x896xf32, #tpu.memory_space<vmem>>, vector<6x768xf32>
    tpu.vector_store %arg12[%c2, %c0_6], %10 {strides = array<i32>} : memref<8x896xf32, #tpu.memory_space<vmem>>, vector<6x768xf32>,
    %c0_7 = arith.constant 0 : index
    %c0_8 = arith.constant 0 : index
    %c0_9 = arith.constant 0 : index
    %12 = vector.load %arg2[%c0_7, %c0_8, %c0_9] : memref<2x8x128xf32, #tpu.memory_space<vmem>>, vector<1x8x128xf32>
    %13 = vector.shape_cast %12 : vector<1x8x128xf32> to vector<8x128xf32>
    %c0_10 = arith.constant 0 : index
    %c768 = arith.constant 768 : index
    %14 = vector.load %arg12[%c0_10, %c768] : memref<8x896xf32, #tpu.memory_space<vmem>>, vector<8x128xf32>
    tpu.vector_store %arg12[%c0_10, %c768], %13 {strides = array<i32>} : memref<8x896xf32, #tpu.memory_space<vmem>>, vector<8x128xf32>,
    %cst_11 = arith.constant 0.000000e+00 : f32
    %15 = vector.broadcast %cst_11 : f32 to vector<8x64xf32>
    %c0_12 = arith.constant 0 : index
    %c64 = arith.constant 64 : index
    %16 = vector.load %arg13[%c0_12, %c64] : memref<8x128xf32, #tpu.memory_space<vmem>>, vector<8x64xf32>
    tpu.vector_store %arg13[%c0_12, %c64], %15 {strides = array<i32>} : memref<8x128xf32, #tpu.memory_space<vmem>>, vector<8x64xf32>,
    %cst_13 = arith.constant 0.000000e+00 : f32
    %17 = vector.broadcast %cst_13 : f32 to vector<8x96xf32>
    %c0_i32_14 = arith.constant 0 : i32
    %c0_i32_15 = arith.constant 0 : i32
    %18 = tpu.memref_slice %arg1[%0, %c0_i32_15] : memref<50x768xf32, #tpu.memory_space<any>> -> memref<1x768xf32, #tpu.memory_space<any>>
    %c0_i32_16 = arith.constant 0 : i32
    %c0_i32_17 = arith.constant 0 : i32
    %19 = tpu.memref_slice %arg12[%c0_i32_16, %c0_i32_17] : memref<8x896xf32, #tpu.memory_space<vmem>> -> memref<1x768xf32, #tpu.memory_space<vmem>>
    %20 = tpu.memref_slice %arg14[%c0_i32_14] : memref<1x!tpu.dma_semaphore, #tpu.memory_space<semaphore_mem>> -> memref<1x!tpu.dma_semaphore, #tpu.memory_space<semaphore_mem>>
    %21 = tpu.memref_squeeze %20 : memref<1x!tpu.dma_semaphore, #tpu.memory_space<semaphore_mem>> -> memref<!tpu.dma_semaphore, #tpu.memory_space<semaphore_mem>>
    tpu.wait_dma2 semaphore(%21 : memref<!tpu.dma_semaphore, #tpu.memory_space<semaphore_mem>>) src(%18 : memref<1x768xf32, #tpu.memory_space<any>>) dst(%19 : memref<1x768xf32, #tpu.memory_space<vmem>>)
    %c0_i32_18 = arith.constant 0 : i32
    %c0_i32_19 = arith.constant 0 : i32
    %22 = tpu.memref_slice %arg1[%5, %c0_i32_19] : memref<50x768xf32, #tpu.memory_space<any>> -> memref<1x768xf32, #tpu.memory_space<any>>
    %c1_i32_20 = arith.constant 1 : i32
    %c0_i32_21 = arith.constant 0 : i32
    %23 = tpu.memref_slice %arg12[%c1_i32_20, %c0_i32_21] : memref<8x896xf32, #tpu.memory_space<vmem>> -> memref<1x768xf32, #tpu.memory_space<vmem>>
    %24 = tpu.memref_slice %arg14[%c0_i32_18] : memref<1x!tpu.dma_semaphore, #tpu.memory_space<semaphore_mem>> -> memref<1x!tpu.dma_semaphore, #tpu.memory_space<semaphore_mem>>
    %25 = tpu.memref_squeeze %24 : memref<1x!tpu.dma_semaphore, #tpu.memory_space<semaphore_mem>> -> memref<!tpu.dma_semaphore, #tpu.memory_space<semaphore_mem>>
    tpu.wait_dma2 semaphore(%25 : memref<!tpu.dma_semaphore, #tpu.memory_space<semaphore_mem>>) src(%22 : memref<1x768xf32, #tpu.memory_space<any>>) dst(%23 : memref<1x768xf32, #tpu.memory_space<vmem>>)
    %c0_22 = arith.constant 0 : index
    %c0_23 = arith.constant 0 : index
    %26 = vector.load %arg12[%c0_22, %c0_23] : memref<8x896xf32, #tpu.memory_space<vmem>>, vector<8x896xf32>
    %c0_24 = arith.constant 0 : index
    %c0_25 = arith.constant 0 : index
    %27 = vector.load %arg4[%c0_24, %c0_25] : memref<896x128xbf16, #tpu.memory_space<vmem>>, vector<896x128xbf16>
    %c0_26 = arith.constant 0 : index
    %c0_27 = arith.constant 0 : index
    %c0_28 = arith.constant 0 : index
    %28 = vector.load %arg6[%c0_26, %c0_27, %c0_28] : memref<2x1x128xf32, #tpu.memory_space<vmem>>, vector<1x1x128xf32>
    %29 = vector.shape_cast %28 : vector<1x1x128xf32> to vector<1x128xf32>
    %c0_29 = arith.constant 0 : index
    %c0_30 = arith.constant 0 : index
    %c0_31 = arith.constant 0 : index
    %30 = vector.load %arg3[%c0_29, %c0_30, %c0_31] : memref<2x8x128xf32, #tpu.memory_space<vmem>>, vector<1x8x128xf32>
    %31 = vector.shape_cast %30 : vector<1x8x128xf32> to vector<8x128xf32>
    %32 = vector.extract_strided_slice %31 {offsets = [0, 0], sizes = [8, 32], strides = [1, 1]} : vector<8x128xf32> to vector<8x32xf32>
    %33 = arith.truncf %26 : vector<8x896xf32> to vector<8x896xbf16>
    %cst_32 = arith.constant dense<0.000000e+00> : vector<8x128xf32>
    %34 = tpu.matmul %33, %27, %cst_32 {dimension_numbers = #tpu.dot_dimension_numbers<[1], [0], [0], [1], [0, 0, 1, 1], [], []>} : vector<8x896xbf16>, vector<896x128xbf16>, vector<8x128xf32> -> vector<8x128xf32>
    %35 = vector.broadcast %29 : vector<1x128xf32> to vector<8x128xf32>
    %36 = arith.addf %34, %35 : vector<8x128xf32>
    %37 = vector.extract_strided_slice %36 {offsets = [0, 0], sizes = [8, 32], strides = [1, 1]} : vector<8x128xf32> to vector<8x32xf32>
    %38 = arith.negf %37 : vector<8x32xf32>
    %39 = math.exp %38 : vector<8x32xf32>
    %cst_33 = arith.constant 1.000000e+00 : f32
    %40 = vector.broadcast %cst_33 : f32 to vector<8x32xf32>
    %41 = arith.addf %40, %39 : vector<8x32xf32>
    %42 = arith.divf %40, %41 : vector<8x32xf32>
    %43 = vector.extract_strided_slice %36 {offsets = [0, 32], sizes = [8, 32], strides = [1, 1]} : vector<8x128xf32> to vector<8x32xf32>
    %44 = arith.negf %43 : vector<8x32xf32>
    %45 = math.exp %44 : vector<8x32xf32>
    %cst_34 = arith.constant 1.000000e+00 : f32
    %46 = vector.broadcast %cst_34 : f32 to vector<8x32xf32>
    %47 = arith.addf %46, %45 : vector<8x32xf32>
    %48 = arith.divf %46, %47 : vector<8x32xf32>
    %49 = vector.extract_strided_slice %36 {offsets = [0, 64], sizes = [8, 32], strides = [1, 1]} : vector<8x128xf32> to vector<8x32xf32>
    %50 = math.tanh %49 : vector<8x32xf32>
    %51 = vector.extract_strided_slice %36 {offsets = [0, 96], sizes = [8, 32], strides = [1, 1]} : vector<8x128xf32> to vector<8x32xf32>
    %52 = arith.negf %51 : vector<8x32xf32>
    %53 = math.exp %52 : vector<8x32xf32>
    %cst_35 = arith.constant 1.000000e+00 : f32
    %54 = vector.broadcast %cst_35 : f32 to vector<8x32xf32>
    %55 = arith.addf %54, %53 : vector<8x32xf32>
    %56 = arith.divf %54, %55 : vector<8x32xf32>
    %57 = arith.mulf %48, %32 : vector<8x32xf32>
    %58 = arith.mulf %42, %50 : vector<8x32xf32>
    %59 = arith.addf %57, %58 : vector<8x32xf32>
    %60 = math.tanh %59 : vector<8x32xf32>
    %61 = arith.mulf %56, %60 : vector<8x32xf32>
    %c0_36 = arith.constant 0 : index
    %c0_37 = arith.constant 0 : index
    %c0_38 = arith.constant 0 : index
    %62 = vector.load %arg10[%c0_36, %c0_37, %c0_38] : memref<2x8x128xf32, #tpu.memory_space<vmem>>, vector<1x8x32xf32>
    %63 = vector.shape_cast %62 : vector<1x8x32xf32> to vector<8x32xf32>
    %64 = vector.shape_cast %61 : vector<8x32xf32> to vector<1x8x32xf32>
    tpu.vector_store %arg10[%c0_36, %c0_37, %c0_38], %64 {strides = array<i32>} : memref<2x8x128xf32, #tpu.memory_space<vmem>>, vector<1x8x32xf32>,
    %c0_39 = arith.constant 0 : index
    %c0_40 = arith.constant 0 : index
    %c32 = arith.constant 32 : index
    %65 = vector.load %arg10[%c0_39, %c0_40, %c32] : memref<2x8x128xf32, #tpu.memory_space<vmem>>, vector<1x8x96xf32>
    %66 = vector.shape_cast %65 : vector<1x8x96xf32> to vector<8x96xf32>
    %67 = vector.shape_cast %17 : vector<8x96xf32> to vector<1x8x96xf32>
    tpu.vector_store %arg10[%c0_39, %c0_40, %c32], %67 {strides = array<i32>} : memref<2x8x128xf32, #tpu.memory_space<vmem>>, vector<1x8x96xf32>,
    %c0_41 = arith.constant 0 : index
    %c0_42 = arith.constant 0 : index
    %c0_43 = arith.constant 0 : index
    %68 = vector.load %arg11[%c0_41, %c0_42, %c0_43] : memref<2x8x128xf32, #tpu.memory_space<vmem>>, vector<1x8x32xf32>
    %69 = vector.shape_cast %68 : vector<1x8x32xf32> to vector<8x32xf32>
    %70 = vector.shape_cast %59 : vector<8x32xf32> to vector<1x8x32xf32>
    tpu.vector_store %arg11[%c0_41, %c0_42, %c0_43], %70 {strides = array<i32>} : memref<2x8x128xf32, #tpu.memory_space<vmem>>, vector<1x8x32xf32>,
    %c0_44 = arith.constant 0 : index
    %c0_45 = arith.constant 0 : index
    %c32_46 = arith.constant 32 : index
    %71 = vector.load %arg11[%c0_44, %c0_45, %c32_46] : memref<2x8x128xf32, #tpu.memory_space<vmem>>, vector<1x8x96xf32>
    %72 = vector.shape_cast %71 : vector<1x8x96xf32> to vector<8x96xf32>
    %73 = vector.shape_cast %17 : vector<8x96xf32> to vector<1x8x96xf32>
    tpu.vector_store %arg11[%c0_44, %c0_45, %c32_46], %73 {strides = array<i32>} : memref<2x8x128xf32, #tpu.memory_space<vmem>>, vector<1x8x96xf32>,
    %c0_47 = arith.constant 0 : index
    %c0_48 = arith.constant 0 : index
    %74 = vector.load %arg13[%c0_47, %c0_48] : memref<8x128xf32, #tpu.memory_space<vmem>>, vector<8x32xf32>
    tpu.vector_store %arg13[%c0_47, %c0_48], %61 {strides = array<i32>} : memref<8x128xf32, #tpu.memory_space<vmem>>, vector<8x32xf32>,
    %c1_49 = arith.constant 1 : index
    %c0_50 = arith.constant 0 : index
    %c0_51 = arith.constant 0 : index
    %75 = vector.load %arg2[%c1_49, %c0_50, %c0_51] : memref<2x8x128xf32, #tpu.memory_space<vmem>>, vector<1x8x128xf32>
    %76 = vector.shape_cast %75 : vector<1x8x128xf32> to vector<8x128xf32>
    %77 = vector.extract_strided_slice %76 {offsets = [0, 0], sizes = [8, 32], strides = [1, 1]} : vector<8x128xf32> to vector<8x32xf32>
    %c0_52 = arith.constant 0 : index
    %c32_53 = arith.constant 32 : index
    %78 = vector.load %arg13[%c0_52, %c32_53] : memref<8x128xf32, #tpu.memory_space<vmem>>, vector<8x32xf32>
    tpu.vector_store %arg13[%c0_52, %c32_53], %77 {strides = array<i32>} : memref<8x128xf32, #tpu.memory_space<vmem>>, vector<8x32xf32>,
    %c0_54 = arith.constant 0 : index
    %c0_55 = arith.constant 0 : index
    %79 = vector.load %arg13[%c0_54, %c0_55] : memref<8x128xf32, #tpu.memory_space<vmem>>, vector<8x128xf32>
    %c0_56 = arith.constant 0 : index
    %c0_57 = arith.constant 0 : index
    %c0_58 = arith.constant 0 : index
    %80 = vector.load %arg5[%c0_56, %c0_57, %c0_58] : memref<1x128x128xbf16, #tpu.memory_space<vmem>>, vector<1x128x128xbf16>
    %81 = vector.shape_cast %80 : vector<1x128x128xbf16> to vector<128x128xbf16>
    %c1_59 = arith.constant 1 : index
    %c0_60 = arith.constant 0 : index
    %c0_61 = arith.constant 0 : index
    %82 = vector.load %arg6[%c1_59, %c0_60, %c0_61] : memref<2x1x128xf32, #tpu.memory_space<vmem>>, vector<1x1x128xf32>
    %83 = vector.shape_cast %82 : vector<1x1x128xf32> to vector<1x128xf32>
    %c1_62 = arith.constant 1 : index
    %c0_63 = arith.constant 0 : index
    %c0_64 = arith.constant 0 : index
    %84 = vector.load %arg3[%c1_62, %c0_63, %c0_64] : memref<2x8x128xf32, #tpu.memory_space<vmem>>, vector<1x8x128xf32>
    %85 = vector.shape_cast %84 : vector<1x8x128xf32> to vector<8x128xf32>
    %86 = vector.extract_strided_slice %85 {offsets = [0, 0], sizes = [8, 32], strides = [1, 1]} : vector<8x128xf32> to vector<8x32xf32>
    %87 = arith.truncf %79 : vector<8x128xf32> to vector<8x128xbf16>
    %cst_65 = arith.constant dense<0.000000e+00> : vector<8x128xf32>
    %88 = tpu.matmul %87, %81, %cst_65 {dimension_numbers = #tpu.dot_dimension_numbers<[1], [0], [0], [1], [0, 0, 1, 1], [], []>} : vector<8x128xbf16>, vector<128x128xbf16>, vector<8x128xf32> -> vector<8x128xf32>
    %89 = vector.broadcast %83 : vector<1x128xf32> to vector<8x128xf32>
    %90 = arith.addf %88, %89 : vector<8x128xf32>
    %91 = vector.extract_strided_slice %90 {offsets = [0, 0], sizes = [8, 32], strides = [1, 1]} : vector<8x128xf32> to vector<8x32xf32>
    %92 = arith.negf %91 : vector<8x32xf32>
    %93 = math.exp %92 : vector<8x32xf32>
    %cst_66 = arith.constant 1.000000e+00 : f32
    %94 = vector.broadcast %cst_66 : f32 to vector<8x32xf32>
    %95 = arith.addf %94, %93 : vector<8x32xf32>
    %96 = arith.divf %94, %95 : vector<8x32xf32>
    %97 = vector.extract_strided_slice %90 {offsets = [0, 32], sizes = [8, 32], strides = [1, 1]} : vector<8x128xf32> to vector<8x32xf32>
    %98 = arith.negf %97 : vector<8x32xf32>
    %99 = math.exp %98 : vector<8x32xf32>
    %cst_67 = arith.constant 1.000000e+00 : f32
    %100 = vector.broadcast %cst_67 : f32 to vector<8x32xf32>
    %101 = arith.addf %100, %99 : vector<8x32xf32>
    %102 = arith.divf %100, %101 : vector<8x32xf32>
    %103 = vector.extract_strided_slice %90 {offsets = [0, 64], sizes = [8, 32], strides = [1, 1]} : vector<8x128xf32> to vector<8x32xf32>
    %104 = math.tanh %103 : vector<8x32xf32>
    %105 = vector.extract_strided_slice %90 {offsets = [0, 96], sizes = [8, 32], strides = [1, 1]} : vector<8x128xf32> to vector<8x32xf32>
    %106 = arith.negf %105 : vector<8x32xf32>
    %107 = math.exp %106 : vector<8x32xf32>
    %cst_68 = arith.constant 1.000000e+00 : f32
    %108 = vector.broadcast %cst_68 : f32 to vector<8x32xf32>
    %109 = arith.addf %108, %107 : vector<8x32xf32>
    %110 = arith.divf %108, %109 : vector<8x32xf32>
    %111 = arith.mulf %102, %86 : vector<8x32xf32>
    %112 = arith.mulf %96, %104 : vector<8x32xf32>
    %113 = arith.addf %111, %112 : vector<8x32xf32>
    %114 = math.tanh %113 : vector<8x32xf32>
    %115 = arith.mulf %110, %114 : vector<8x32xf32>
    %c1_69 = arith.constant 1 : index
    %c0_70 = arith.constant 0 : index
    %c0_71 = arith.constant 0 : index
    %116 = vector.load %arg10[%c1_69, %c0_70, %c0_71] : memref<2x8x128xf32, #tpu.memory_space<vmem>>, vector<1x8x32xf32>
    %117 = vector.shape_cast %116 : vector<1x8x32xf32> to vector<8x32xf32>
    %118 = vector.shape_cast %115 : vector<8x32xf32> to vector<1x8x32xf32>
    tpu.vector_store %arg10[%c1_69, %c0_70, %c0_71], %118 {strides = array<i32>} : memref<2x8x128xf32, #tpu.memory_space<vmem>>, vector<1x8x32xf32>,
    %c1_72 = arith.constant 1 : index
    %c0_73 = arith.constant 0 : index
    %c32_74 = arith.constant 32 : index
    %119 = vector.load %arg10[%c1_72, %c0_73, %c32_74] : memref<2x8x128xf32, #tpu.memory_space<vmem>>, vector<1x8x96xf32>
    %120 = vector.shape_cast %119 : vector<1x8x96xf32> to vector<8x96xf32>
    %121 = vector.shape_cast %17 : vector<8x96xf32> to vector<1x8x96xf32>
    tpu.vector_store %arg10[%c1_72, %c0_73, %c32_74], %121 {strides = array<i32>} : memref<2x8x128xf32, #tpu.memory_space<vmem>>, vector<1x8x96xf32>,
    %c1_75 = arith.constant 1 : index
    %c0_76 = arith.constant 0 : index
    %c0_77 = arith.constant 0 : index
    %122 = vector.load %arg11[%c1_75, %c0_76, %c0_77] : memref<2x8x128xf32, #tpu.memory_space<vmem>>, vector<1x8x32xf32>
    %123 = vector.shape_cast %122 : vector<1x8x32xf32> to vector<8x32xf32>
    %124 = vector.shape_cast %113 : vector<8x32xf32> to vector<1x8x32xf32>
    tpu.vector_store %arg11[%c1_75, %c0_76, %c0_77], %124 {strides = array<i32>} : memref<2x8x128xf32, #tpu.memory_space<vmem>>, vector<1x8x32xf32>,
    %c1_78 = arith.constant 1 : index
    %c0_79 = arith.constant 0 : index
    %c32_80 = arith.constant 32 : index
    %125 = vector.load %arg11[%c1_78, %c0_79, %c32_80] : memref<2x8x128xf32, #tpu.memory_space<vmem>>, vector<1x8x96xf32>
    %126 = vector.shape_cast %125 : vector<1x8x96xf32> to vector<8x96xf32>
    %127 = vector.shape_cast %17 : vector<8x96xf32> to vector<1x8x96xf32>
    tpu.vector_store %arg11[%c1_78, %c0_79, %c32_80], %127 {strides = array<i32>} : memref<2x8x128xf32, #tpu.memory_space<vmem>>, vector<1x8x96xf32>,
    %128 = arith.truncf %115 : vector<8x32xf32> to vector<8x32xbf16>
    %c0_81 = arith.constant 0 : index
    %c0_82 = arith.constant 0 : index
    %129 = vector.load %arg7[%c0_81, %c0_82] : memref<32x128xbf16, #tpu.memory_space<vmem>>, vector<32x128xbf16>
    %cst_83 = arith.constant dense<0.000000e+00> : vector<8x128xf32>
    %130 = tpu.matmul %128, %129, %cst_83 {dimension_numbers = #tpu.dot_dimension_numbers<[1], [0], [0], [1], [0, 0, 1, 1], [], []>} : vector<8x32xbf16>, vector<32x128xbf16>, vector<8x128xf32> -> vector<8x128xf32>
    %c0_84 = arith.constant 0 : index
    %c0_85 = arith.constant 0 : index
    %131 = vector.load %arg8[%c0_84, %c0_85] : memref<1x128xf32, #tpu.memory_space<vmem>>, vector<1x128xf32>
    %132 = vector.broadcast %131 : vector<1x128xf32> to vector<8x128xf32>
    %133 = arith.addf %130, %132 : vector<8x128xf32>
    %c0_86 = arith.constant 0 : index
    %c0_87 = arith.constant 0 : index
    %134 = vector.load %arg9[%c0_86, %c0_87] : memref<8x128xf32, #tpu.memory_space<vmem>>, vector<8x128xf32>
    tpu.vector_store %arg9[%c0_86, %c0_87], %133 {strides = array<i32>} : memref<8x128xf32, #tpu.memory_space<vmem>>, vector<8x128xf32>,
    return
  }
}

</mosaic_0001>

<llo_original>
// kernel: step_decoder_forward.1
$region0: #{step_decoder_forward.1}
  #allocation0 [shape = 'u32[]', space=smem, size = 0x4, offset = 0x4, fixed_abs, tag = 'smem constant byte address 0x4 - core index']
  #allocation1 [shape = 'u32[144,128]{1,0:T(1,128)}', space=vmem, size = 0x12000, scoped, tag = 'internal scratch']
  #allocation2 [shape = 'f32[8,896]{1,0:T(8,128)}', space=vmem, size = 0x7000, scoped, tag = 'scratch operand']
  #allocation3 [shape = 'f32[8,128]{1,0:T(8,128)}', space=vmem, size = 0x1000, scoped, tag = 'scratch operand']
  #allocation4 [shape = 's32[1]{0}', space=sflag, size = 0x4, scoped, tag = 'scratch operand']
  #allocation11 [shape = 's32[]', space=sflag, size = 0x4, offset = 0, fixed_abs, tag = 'sflag constant byte address 0x0 - dummy sync flag']
  #allocation12 [shape = 's32[]', space=sflag, size = 0x4, offset = 0, fixed_abs, tag = 'sflag constant byte address 0x0 - dummy sync flag']
  %s0 = inlined_call_operand.vmem [shape: s32[2], index: 0, kind: input, shape index: {}]
  %s1 = inlined_call_operand.hbm [shape: f32[50,768], index: 1, kind: input, shape index: {}]
  %s2 = inlined_call_operand.vmem [shape: f32[2,8,128], index: 2, kind: input, shape index: {}, may-alias: {2,10}]
  %s3 = inlined_call_operand.vmem [shape: f32[2,8,128], index: 3, kind: input, shape index: {}, may-alias: {3,11}]
  %s4 = inlined_call_operand.hbm [shape: bf16[896,128], index: 4, kind: input, shape index: {}]
  %s5 = inlined_call_operand.hbm [shape: bf16[1,128,128], index: 5, kind: input, shape index: {}]
  %s6 = inlined_call_operand.vmem [shape: f32[2,1,128], index: 6, kind: input, shape index: {}]
  %s7 = inlined_call_operand.vmem [shape: bf16[32,128], index: 7, kind: input, shape index: {}]
  %s8 = inlined_call_operand.vmem [shape: f32[1,128], index: 8, kind: input, shape index: {}]
  %s9 = inlined_call_operand.vmem [shape: f32[8,128], index: 9, kind: output, shape index: {0}]
  %s10 = inlined_call_operand.vmem [shape: f32[2,8,128], index: 10, kind: output, shape index: {1}, may-alias: {2,10}]
  %s11 = inlined_call_operand.vmem [shape: f32[2,8,128], index: 11, kind: output, shape index: {2}, may-alias: {3,11}]
  %12 = xla_tuple %s9, %s10, %s11
  %s13 = sld [smem:[#allocation0]]
  $region70: #{step_decoder_forward.1} parent=0
    _
  %s15 = ssub.s32 1, %s13
  %s16 = scalar_select 0, %s15, %s13
  $region1: #{step_decoder_forward.1} parent=0
    #allocation5 [shape = 'u8[512]{0}', space=smem, size = 0x200, scoped, tag = 'input window, operand 0, single buffered']
    #allocation6 [shape = 's32[1]{0}', space=sflag, size = 0x4, scoped, tag = 'scoped memory for step_decoder_forward.1']
    #allocation7 [shape = 's32[1]{0}', space=sflag, size = 0x4, scoped, tag = 'scoped memory for step_decoder_forward.1']
    #allocation8 [shape = 'u8[229376]{0}', space=vmem, size = 0x38000, scoped, tag = 'input window, operand 4, single buffered']
    #allocation9 [shape = 'u8[32768]{0}', space=vmem, size = 0x8000, scoped, tag = 'input window, operand 5, single buffered']
    #allocation10 [shape = 's32[1]{0}', space=sflag, size = 0x4, scoped, tag = 'scoped memory for step_decoder_forward.1']
    %17 = vsyncpa [#allocation7], 0
    %18 = vsyncpa [#allocation6], 0
    %19 = vsyncpa [#allocation10], 0
    // Predicated region
    $region2: #{step_decoder_forward.1} parent=1 // pred_check
      _
    $region3: #{step_decoder_forward.1} parent=1 // pred_check_branch
      %21 = sbr.rel (0) target = $region5
    $region4: #{step_decoder_forward.1} parent=1 // pred_region
      %s23 = ssub.s32 16, 16
      %24 = vsyncadd [#allocation7], %s23
      %s26 = sshll.u32 %s0, 4
      %s27 = int_to_ptr.vmem [resolvable:$true] %s26
      %29 = dma.vmem_to_smem %s27, 16, [#allocation5], [#allocation7]
    $region5: #{step_decoder_forward.1} parent=1 // pred_fallthru
      _
    // Predicated region
    $region6: #{step_decoder_forward.1} parent=1 // pred_check
      _
    $region7: #{step_decoder_forward.1} parent=1 // pred_check_branch
      %31 = sbr.rel (0) target = $region9
    $region8: #{step_decoder_forward.1} parent=1 // pred_region
      _
    $region9: #{step_decoder_forward.1} parent=1 // pred_fallthru
      _
    // Predicated region
    $region10: #{step_decoder_forward.1} parent=1 // pred_check
      _
    $region11: #{step_decoder_forward.1} parent=1 // pred_check_branch
      %33 = sbr.rel (0) target = $region13
    $region12: #{step_decoder_forward.1} parent=1 // pred_region
      _
    $region13: #{step_decoder_forward.1} parent=1 // pred_fallthru
      _
    // Predicated region
    $region14: #{step_decoder_forward.1} parent=1 // pred_check
      _
    $region15: #{step_decoder_forward.1} parent=1 // pred_check_branch
      %35 = sbr.rel (0) target = $region17
    $region16: #{step_decoder_forward.1} parent=1 // pred_region
      %s37 = ssub.s32 7168, 7168
      %38 = vsyncadd [#allocation6], %s37
      %s39 = sshll.u32 [#allocation8], 4
      %s40 = int_to_ptr.vmem [resolvable:$true] %s39
      %45 = dma.hbm_to_vmem [thread:$0]  %s4, 7168, %s40, [#allocation6], 64, 64, 4
    $region17: #{step_decoder_forward.1} parent=1 // pred_fallthru
      _
    // Predicated region
    $region18: #{step_decoder_forward.1} parent=1 // pred_check
      _
    $region19: #{step_decoder_forward.1} parent=1 // pred_check_branch
      %47 = sbr.rel (0) target = $region21
    $region20: #{step_decoder_forward.1} parent=1 // pred_region
      %s49 = ssub.s32 1024, 1024
      %50 = vsyncadd [#allocation10], %s49
      %s51 = sshll.u32 [#allocation9], 4
      %s52 = int_to_ptr.vmem [resolvable:$true] %s51
      %57 = dma.hbm_to_vmem [thread:$0]  %s5, 1024, %s52, [#allocation10], 64, 64, 4
    $region21: #{step_decoder_forward.1} parent=1 // pred_fallthru
      _
    // Predicated region
    $region22: #{step_decoder_forward.1} parent=1 // pred_check
      _
    $region23: #{step_decoder_forward.1} parent=1 // pred_check_branch
      %59 = sbr.rel (0) target = $region25
    $region24: #{step_decoder_forward.1} parent=1 // pred_region
      _
    $region25: #{step_decoder_forward.1} parent=1 // pred_fallthru
      _
    // Predicated region
    $region26: #{step_decoder_forward.1} parent=1 // pred_check
      _
    $region27: #{step_decoder_forward.1} parent=1 // pred_check_branch
      %61 = sbr.rel (0) target = $region29
    $region28: #{step_decoder_forward.1} parent=1 // pred_region
      _
    $region29: #{step_decoder_forward.1} parent=1 // pred_fallthru
      _
    // Predicated region
    $region30: #{step_decoder_forward.1} parent=1 // pred_check
      _
    $region31: #{step_decoder_forward.1} parent=1 // pred_check_branch
      %63 = sbr.rel (0) target = $region33
    $region32: #{step_decoder_forward.1} parent=1 // pred_region
      _
    $region33: #{step_decoder_forward.1} parent=1 // pred_fallthru
      _
    // Predicated region
    $region34: #{step_decoder_forward.1} parent=1 // pred_check
      _
    $region35: #{step_decoder_forward.1} parent=1 // pred_check_branch
      %65 = sbr.rel (0) target = $region37
    $region36: #{step_decoder_forward.1} parent=1 // pred_region
      %66 = dma.done [#allocation7], 16
    $region37: #{step_decoder_forward.1} parent=1 // pred_fallthru
      _
    // Predicated region
    $region38: #{step_decoder_forward.1} parent=1 // pred_check
      _
    $region39: #{step_decoder_forward.1} parent=1 // pred_check_branch
      %68 = sbr.rel (0) target = $region41
    $region40: #{step_decoder_forward.1} parent=1 // pred_region
      %69 = dma.done [#allocation6], 7168
    $region41: #{step_decoder_forward.1} parent=1 // pred_fallthru
      _
    // Predicated region
    $region42: #{step_decoder_forward.1} parent=1 // pred_check
      _
    $region43: #{step_decoder_forward.1} parent=1 // pred_check_branch
      %71 = sbr.rel (0) target = $region45
    $region44: #{step_decoder_forward.1} parent=1 // pred_region
      %72 = dma.done [#allocation10], 1024
    $region45: #{step_decoder_forward.1} parent=1 // pred_fallthru
      _
    %73 = sfence
    %s75 = sld [smem:[#allocation5]]
    %s76 = sshrl.u32 %s75, 3
    %s77 = sand.u32 %s75, 7
    %s78 = smul.u32 %s76, 48
    %s79 = sadd.s32 %s77, %s78
    %s80 = smul.addr %s79, 16
    %s81 = scalar_lea.hbm %s1, %s80
    %s83 = sshll.u32 [#allocation2], 4
    %s84 = int_to_ptr.vmem [resolvable:$true] %s83
    %86 = dma.hbm_to_vmem [thread:$0]  %s81, 96, %s84, [#allocation4], 128, 128, 1
    %s87 = sld [smem:[#allocation5 + $0x1]]
    %s88 = sshrl.u32 %s87, 3
    %s89 = sand.u32 %s87, 7
    %s90 = smul.u32 %s88, 48
    %s91 = sadd.s32 %s89, %s90
    %s92 = smul.addr %s91, 16
    %s93 = scalar_lea.hbm %s1, %s92
    %s94 = scalar_lea.vmem [#allocation2], 1
    %s96 = sshll.u32 %s94, 4
    %s97 = int_to_ptr.vmem [resolvable:$true] %s96
    %99 = dma.hbm_to_vmem [thread:$0]  %s93, 96, %s97, [#allocation4], 128, 128, 1
    %100 = vst [vmem:[#allocation2] sm:$0xfc] 0.0
    %101 = vst [vmem:[#allocation2 + $0x8] sm:$0xfc] 0.0
    %102 = vst [vmem:[#allocation2 + $0x10] sm:$0xfc] 0.0
    %103 = vst [vmem:[#allocation2 + $0x18] sm:$0xfc] 0.0
    %104 = vst [vmem:[#allocation2 + $0x20] sm:$0xfc] 0.0
    %105 = vst [vmem:[#allocation2 + $0x28] sm:$0xfc] 0.0
    %v106 = vld [vmem:[%s2] sm:$0xff]
    %107 = vst [vmem:[#allocation2 + $0x30] sm:$0xff] %v106
    %vm108 = vcmask 1048064
    %109 = vst.msk [vmem:[#allocation3] sm:$0xff] %vm108, 0.0
    %s110 = smul.u32 1, 6
    %s111 = sshll.u32 %s110, 4
    %112 = dma.done [#allocation4], %s111
    %s113 = sshll.u32 %s110, 4
    %114 = dma.done [#allocation4], %s113
    %v115 = vld [vmem:[#allocation2] sm:$0xff]
    %v116 = vld [vmem:[#allocation2 + $0x8] sm:$0xff]
    %v117 = vld [vmem:[#allocation2 + $0x10] sm:$0xff]
    %v118 = vld [vmem:[#allocation2 + $0x18] sm:$0xff]
    %v119 = vld [vmem:[#allocation2 + $0x20] sm:$0xff]
    %v120 = vld [vmem:[#allocation2 + $0x28] sm:$0xff]
    %v121 = vld [vmem:[#allocation2 + $0x30] sm:$0xff]
    %v122 = vld [vmem:[#allocation8] sm:$0xf]
    %v123 = vld [vmem:[#allocation8 + $0x4] sm:$0xf]
    %v124 = vld [vmem:[#allocation8 + $0x8] sm:$0xf]
    %v125 = vld [vmem:[#allocation8 + $0xc] sm:$0xf]
    %v126 = vld [vmem:[#allocation8 + $0x10] sm:$0xf]
    %v127 = vld [vmem:[#allocation8 + $0x14] sm:$0xf]
    %v128 = vld [vmem:[#allocation8 + $0x18] sm:$0xf]
    %v129 = vld [vmem:[#allocation8 + $0x1c] sm:$0xf]
    %v130 = vld [vmem:[#allocation8 + $0x20] sm:$0xf]
    %v131 = vld [vmem:[#allocation8 + $0x24] sm:$0xf]
    %v132 = vld [vmem:[#allocation8 + $0x28] sm:$0xf]
    %v133 = vld [vmem:[#allocation8 + $0x2c] sm:$0xf]
    %v134 = vld [vmem:[#allocation8 + $0x30] sm:$0xf]
    %v135 = vld [vmem:[#allocation8 + $0x34] sm:$0xf]
    %v136 = vld [vmem:[#allocation8 + $0x38] sm:$0xf]
    %v137 = vld [vmem:[#allocation8 + $0x3c] sm:$0xf]
    %v138 = vld [vmem:[#allocation8 + $0x40] sm:$0xf]
    %v139 = vld [vmem:[#allocation8 + $0x44] sm:$0xf]
    %v140 = vld [vmem:[#allocation8 + $0x48] sm:$0xf]
    %v141 = vld [vmem:[#allocation8 + $0x4c] sm:$0xf]
    %v142 = vld [vmem:[#allocation8 + $0x50] sm:$0xf]
    %v143 = vld [vmem:[#allocation8 + $0x54] sm:$0xf]
    %v144 = vld [vmem:[#allocation8 + $0x58] sm:$0xf]
    %v145 = vld [vmem:[#allocation8 + $0x5c] sm:$0xf]
    %v146 = vld [vmem:[#allocation8 + $0x60] sm:$0xf]
    %v147 = vld [vmem:[#allocation8 + $0x64] sm:$0xf]
    %v148 = vld [vmem:[#allocation8 + $0x68] sm:$0xf]
    %v149 = vld [vmem:[#allocation8 + $0x6c] sm:$0xf]
    %v150 = vld [vmem:[#allocation8 + $0x70] sm:$0xf]
    %v151 = vld [vmem:[#allocation8 + $0x74] sm:$0xf]
    %v152 = vld [vmem:[#allocation8 + $0x78] sm:$0xf]
    %v153 = vld [vmem:[#allocation8 + $0x7c] sm:$0xf]
    %v154 = vld [vmem:[#allocation8 + $0x80] sm:$0xf]
    %v155 = vld [vmem:[#allocation8 + $0x84] sm:$0xf]
    %v156 = vld [vmem:[#allocation8 + $0x88] sm:$0xf]
    %v157 = vld [vmem:[#allocation8 + $0x8c] sm:$0xf]
    %v158 = vld [vmem:[#allocation8 + $0x90] sm:$0xf]
    %v159 = vld [vmem:[#allocation8 + $0x94] sm:$0xf]
    %v160 = vld [vmem:[#allocation8 + $0x98] sm:$0xf]
    %v161 = vld [vmem:[#allocation8 + $0x9c] sm:$0xf]
    %v162 = vld [vmem:[#allocation8 + $0xa0] sm:$0xf]
    %v163 = vld [vmem:[#allocation8 + $0xa4] sm:$0xf]
    %v164 = vld [vmem:[#allocation8 + $0xa8] sm:$0xf]
    %v165 = vld [vmem:[#allocation8 + $0xac] sm:$0xf]
    %v166 = vld [vmem:[#allocation8 + $0xb0] sm:$0xf]
    %v167 = vld [vmem:[#allocation8 + $0xb4] sm:$0xf]
    %v168 = vld [vmem:[#allocation8 + $0xb8] sm:$0xf]
    %v169 = vld [vmem:[#allocation8 + $0xbc] sm:$0xf]
    %v170 = vld [vmem:[#allocation8 + $0xc0] sm:$0xf]
    %v171 = vld [vmem:[#allocation8 + $0xc4] sm:$0xf]
    %v172 = vld [vmem:[#allocation8 + $0xc8] sm:$0xf]
    %v173 = vld [vmem:[#allocation8 + $0xcc] sm:$0xf]
    %v174 = vld [vmem:[#allocation8 + $0xd0] sm:$0xf]
    %v175 = vld [vmem:[#allocation8 + $0xd4] sm:$0xf]
    %v176 = vld [vmem:[#allocation8 + $0xd8] sm:$0xf]
    %v177 = vld [vmem:[#allocation8 + $0xdc] sm:$0xf]
    %v178 = vld [vmem:[#allocation8 + $0xe0] sm:$0xf]
    %v179 = vld [vmem:[#allocation8 + $0xe4] sm:$0xf]
    %v180 = vld [vmem:[#allocation8 + $0xe8] sm:$0xf]
    %v181 = vld [vmem:[#allocation8 + $0xec] sm:$0xf]
    %v182 = vld [vmem:[#allocation8 + $0xf0] sm:$0xf]
    %v183 = vld [vmem:[#allocation8 + $0xf4] sm:$0xf]
    %v184 = vld [vmem:[#allocation8 + $0xf8] sm:$0xf]
    %v185 = vld [vmem:[#allocation8 + $0xfc] sm:$0xf]
    %v186 = vld [vmem:[#allocation8 + $0x100] sm:$0xf]
    %v187 = vld [vmem:[#allocation8 + $0x104] sm:$0xf]
    %v188 = vld [vmem:[#allocation8 + $0x108] sm:$0xf]
    %v189 = vld [vmem:[#allocation8 + $0x10c] sm:$0xf]
    %v190 = vld [vmem:[#allocation8 + $0x110] sm:$0xf]
    %v191 = vld [vmem:[#allocation8 + $0x114] sm:$0xf]
    %v192 = vld [vmem:[#allocation8 + $0x118] sm:$0xf]
    %v193 = vld [vmem:[#allocation8 + $0x11c] sm:$0xf]
    %v194 = vld [vmem:[#allocation8 + $0x120] sm:$0xf]
    %v195 = vld [vmem:[#allocation8 + $0x124] sm:$0xf]
    %v196 = vld [vmem:[#allocation8 + $0x128] sm:$0xf]
    %v197 = vld [vmem:[#allocation8 + $0x12c] sm:$0xf]
    %v198 = vld [vmem:[#allocation8 + $0x130] sm:$0xf]
    %v199 = vld [vmem:[#allocation8 + $0x134] sm:$0xf]
    %v200 = vld [vmem:[#allocation8 + $0x138] sm:$0xf]
    %v201 = vld [vmem:[#allocation8 + $0x13c] sm:$0xf]
    %v202 = vld [vmem:[#allocation8 + $0x140] sm:$0xf]
    %v203 = vld [vmem:[#allocation8 + $0x144] sm:$0xf]
    %v204 = vld [vmem:[#allocation8 + $0x148] sm:$0xf]
    %v205 = vld [vmem:[#allocation8 + $0x14c] sm:$0xf]
    %v206 = vld [vmem:[#allocation8 + $0x150] sm:$0xf]
    %v207 = vld [vmem:[#allocation8 + $0x154] sm:$0xf]
    %v208 = vld [vmem:[#allocation8 + $0x158] sm:$0xf]
    %v209 = vld [vmem:[#allocation8 + $0x15c] sm:$0xf]
    %v210 = vld [vmem:[#allocation8 + $0x160] sm:$0xf]
    %v211 = vld [vmem:[#allocation8 + $0x164] sm:$0xf]
    %v212 = vld [vmem:[#allocation8 + $0x168] sm:$0xf]
    %v213 = vld [vmem:[#allocation8 + $0x16c] sm:$0xf]
    %v214 = vld [vmem:[#allocation8 + $0x170] sm:$0xf]
    %v215 = vld [vmem:[#allocation8 + $0x174] sm:$0xf]
    %v216 = vld [vmem:[#allocation8 + $0x178] sm:$0xf]
    %v217 = vld [vmem:[#allocation8 + $0x17c] sm:$0xf]
    %v218 = vld [vmem:[#allocation8 + $0x180] sm:$0xf]
    %v219 = vld [vmem:[#allocation8 + $0x184] sm:$0xf]
    %v220 = vld [vmem:[#allocation8 + $0x188] sm:$0xf]
    %v221 = vld [vmem:[#allocation8 + $0x18c] sm:$0xf]
    %v222 = vld [vmem:[#allocation8 + $0x190] sm:$0xf]
    %v223 = vld [vmem:[#allocation8 + $0x194] sm:$0xf]
    %v224 = vld [vmem:[#allocation8 + $0x198] sm:$0xf]
    %v225 = vld [vmem:[#allocation8 + $0x19c] sm:$0xf]
    %v226 = vld [vmem:[#allocation8 + $0x1a0] sm:$0xf]
    %v227 = vld [vmem:[#allocation8 + $0x1a4] sm:$0xf]
    %v228 = vld [vmem:[#allocation8 + $0x1a8] sm:$0xf]
    %v229 = vld [vmem:[#allocation8 + $0x1ac] sm:$0xf]
    %v230 = vld [vmem:[#allocation8 + $0x1b0] sm:$0xf]
    %v231 = vld [vmem:[#allocation8 + $0x1b4] sm:$0xf]
    %v232 = vld [vmem:[#allocation8 + $0x1b8] sm:$0xf]
    %v233 = vld [vmem:[#allocation8 + $0x1bc] sm:$0xf]
    %v234 = vld [vmem:[%s6] sm:$0x1]
    %v235 = vld [vmem:[%s3] sm:$0xff]
    %v236 = vpack.c.bf16 %v115, %v115
    %v237 = vpack.c.bf16 %v116, %v116
    %v238 = vpack.c.bf16 %v117, %v117
    %v239 = vpack.c.bf16 %v118, %v118
    %v240 = vpack.c.bf16 %v119, %v119
    %v241 = vpack.c.bf16 %v120, %v120
    %v242 = vpack.c.bf16 %v121, %v121
    %v244 = vlaneseq
    %v245 = vshrl.u32 %v244, 7
    %v246 = vsub.s32 0, %v245
    %v247 = vrot.slane %v234, %v246
    %v361 = vunpack.c.l.b16 %v122
    %v362 = vunpack.c.l.b16 %v123
    %v363 = vunpack.c.l.b16 %v124
    %v364 = vunpack.c.l.b16 %v125
    %v365 = vunpack.c.l.b16 %v126
    %v366 = vunpack.c.l.b16 %v127
    %v367 = vunpack.c.l.b16 %v128
    %v368 = vunpack.c.l.b16 %v129
    %v369 = vunpack.c.l.b16 %v130
    %v370 = vunpack.c.l.b16 %v131
    %v371 = vunpack.c.l.b16 %v132
    %v372 = vunpack.c.l.b16 %v133
    %v373 = vunpack.c.l.b16 %v134
    %v374 = vunpack.c.l.b16 %v135
    %v375 = vunpack.c.l.b16 %v136
    %v376 = vunpack.c.l.b16 %v137
    %v377 = vunpack.c.l.b16 %v138
    %v378 = vunpack.c.l.b16 %v139
    %v379 = vunpack.c.l.b16 %v140
    %v380 = vunpack.c.l.b16 %v141
    %v381 = vunpack.c.l.b16 %v142
    %v382 = vunpack.c.l.b16 %v143
    %v383 = vunpack.c.l.b16 %v144
    %v384 = vunpack.c.l.b16 %v145
    %v385 = vunpack.c.l.b16 %v146
    %v386 = vunpack.c.l.b16 %v147
    %v387 = vunpack.c.l.b16 %v148
    %v388 = vunpack.c.l.b16 %v149
    %v389 = vunpack.c.l.b16 %v150
    %v390 = vunpack.c.l.b16 %v151
    %v391 = vunpack.c.l.b16 %v152
    %v392 = vunpack.c.l.b16 %v153
    %v393 = vunpack.c.l.b16 %v154
    %v394 = vunpack.c.l.b16 %v155
    %v395 = vunpack.c.l.b16 %v156
    %v396 = vunpack.c.l.b16 %v157
    %v397 = vunpack.c.l.b16 %v158
    %v398 = vunpack.c.l.b16 %v159
    %v399 = vunpack.c.l.b16 %v160
    %v400 = vunpack.c.l.b16 %v161
    %v401 = vunpack.c.l.b16 %v162
    %v402 = vunpack.c.l.b16 %v163
    %v403 = vunpack.c.l.b16 %v164
    %v404 = vunpack.c.l.b16 %v165
    %v405 = vunpack.c.l.b16 %v166
    %v406 = vunpack.c.l.b16 %v167
    %v407 = vunpack.c.l.b16 %v168
    %v408 = vunpack.c.l.b16 %v169
    %v409 = vunpack.c.l.b16 %v170
    %v410 = vunpack.c.l.b16 %v171
    %v411 = vunpack.c.l.b16 %v172
    %v412 = vunpack.c.l.b16 %v173
    %v413 = vunpack.c.l.b16 %v174
    %v414 = vunpack.c.l.b16 %v175
    %v415 = vunpack.c.l.b16 %v176
    %v416 = vunpack.c.l.b16 %v177
    %v417 = vunpack.c.l.b16 %v178
    %v418 = vunpack.c.l.b16 %v179
    %v419 = vunpack.c.l.b16 %v180
    %v420 = vunpack.c.l.b16 %v181
    %v421 = vunpack.c.l.b16 %v182
    %v422 = vunpack.c.l.b16 %v183
    %v423 = vunpack.c.l.b16 %v184
    %v424 = vunpack.c.l.b16 %v185
    %v425 = vunpack.c.l.b16 %v186
    %v426 = vunpack.c.l.b16 %v187
    %v427 = vunpack.c.l.b16 %v188
    %v428 = vunpack.c.l.b16 %v189
    %v429 = vunpack.c.l.b16 %v190
    %v430 = vunpack.c.l.b16 %v191
    %v431 = vunpack.c.l.b16 %v192
    %v432 = vunpack.c.l.b16 %v193
    %v433 = vunpack.c.l.b16 %v194
    %v434 = vunpack.c.l.b16 %v195
    %v435 = vunpack.c.l.b16 %v196
    %v436 = vunpack.c.l.b16 %v197
    %v437 = vunpack.c.l.b16 %v198
    %v438 = vunpack.c.l.b16 %v199
    %v439 = vunpack.c.l.b16 %v200
    %v440 = vunpack.c.l.b16 %v201
    %v441 = vunpack.c.l.b16 %v202
    %v442 = vunpack.c.l.b16 %v203
    %v443 = vunpack.c.l.b16 %v204
    %v444 = vunpack.c.l.b16 %v205
    %v445 = vunpack.c.l.b16 %v206
    %v446 = vunpack.c.l.b16 %v207
    %v447 = vunpack.c.l.b16 %v208
    %v448 = vunpack.c.l.b16 %v209
    %v449 = vunpack.c.l.b16 %v210
    %v450 = vunpack.c.l.b16 %v211
    %v451 = vunpack.c.l.b16 %v212
    %v452 = vunpack.c.l.b16 %v213
    %v453 = vunpack.c.l.b16 %v214
    %v454 = vunpack.c.l.b16 %v215
    %v455 = vunpack.c.l.b16 %v216
    %v456 = vunpack.c.l.b16 %v217
    %v457 = vunpack.c.l.b16 %v218
    %v458 = vunpack.c.l.b16 %v219
    %v459 = vunpack.c.l.b16 %v220
    %v460 = vunpack.c.l.b16 %v221
    %v461 = vunpack.c.l.b16 %v222
    %v462 = vunpack.c.l.b16 %v223
    %v463 = vunpack.c.l.b16 %v224
    %v464 = vunpack.c.l.b16 %v225
    %v465 = vunpack.c.l.b16 %v226
    %v466 = vunpack.c.l.b16 %v227
    %v467 = vunpack.c.l.b16 %v228
    %v468 = vunpack.c.l.b16 %v229
    %v469 = vunpack.c.l.b16 %v230
    %v470 = vunpack.c.l.b16 %v231
    %v471 = vunpack.c.l.b16 %v232
    %v472 = vunpack.c.l.b16 %v233
    %v473 = vpack.c.b16 %v362, %v361
    %v474 = vpack.c.b16 %v364, %v363
    %v475 = vpack.c.b16 %v366, %v365
    %v476 = vpack.c.b16 %v368, %v367
    %v477 = vpack.c.b16 %v370, %v369
    %v478 = vpack.c.b16 %v372, %v371
    %v479 = vpack.c.b16 %v374, %v373
    %v480 = vpack.c.b16 %v376, %v375
    %v481 = vpack.c.b16 %v378, %v377
    %v482 = vpack.c.b16 %v380, %v379
    %v483 = vpack.c.b16 %v382, %v381
    %v484 = vpack.c.b16 %v384, %v383
    %v485 = vpack.c.b16 %v386, %v385
    %v486 = vpack.c.b16 %v388, %v387
    %v487 = vpack.c.b16 %v390, %v389
    %v488 = vpack.c.b16 %v392, %v391
    %v489 = vpack.c.b16 %v394, %v393
    %v490 = vpack.c.b16 %v396, %v395
    %v491 = vpack.c.b16 %v398, %v397
    %v492 = vpack.c.b16 %v400, %v399
    %v493 = vpack.c.b16 %v402, %v401
    %v494 = vpack.c.b16 %v404, %v403
    %v495 = vpack.c.b16 %v406, %v405
    %v496 = vpack.c.b16 %v408, %v407
    %v497 = vpack.c.b16 %v410, %v409
    %v498 = vpack.c.b16 %v412, %v411
    %v499 = vpack.c.b16 %v414, %v413
    %v500 = vpack.c.b16 %v416, %v415
    %v501 = vpack.c.b16 %v418, %v417
    %v502 = vpack.c.b16 %v420, %v419
    %v503 = vpack.c.b16 %v422, %v421
    %v504 = vpack.c.b16 %v424, %v423
    %v505 = vpack.c.b16 %v426, %v425
    %v506 = vpack.c.b16 %v428, %v427
    %v507 = vpack.c.b16 %v430, %v429
    %v508 = vpack.c.b16 %v432, %v431
    %v509 = vpack.c.b16 %v434, %v433
    %v510 = vpack.c.b16 %v436, %v435
    %v511 = vpack.c.b16 %v438, %v437
    %v512 = vpack.c.b16 %v440, %v439
    %v513 = vpack.c.b16 %v442, %v441
    %v514 = vpack.c.b16 %v444, %v443
    %v515 = vpack.c.b16 %v446, %v445
    %v516 = vpack.c.b16 %v448, %v447
    %v517 = vpack.c.b16 %v450, %v449
    %v518 = vpack.c.b16 %v452, %v451
    %v519 = vpack.c.b16 %v454, %v453
    %v520 = vpack.c.b16 %v456, %v455
    %v521 = vpack.c.b16 %v458, %v457
    %v522 = vpack.c.b16 %v460, %v459
    %v523 = vpack.c.b16 %v462, %v461
    %v524 = vpack.c.b16 %v464, %v463
    %v525 = vpack.c.b16 %v466, %v465
    %v526 = vpack.c.b16 %v468, %v467
    %v527 = vpack.c.b16 %v470, %v469
    %v528 = vpack.c.b16 %v472, %v471
    %585 = vmatprep.subr.bf16.mxu0 0
    %586 = vmatpush1.bf16.msra.mxu0 %v473
    %587 = vmatprep.subr.bf16.mxu0 0
    %588 = vmatpush1.bf16.msra.mxu0 %v474
    %589 = vmatprep.subr.bf16.mxu0 0
    %590 = vmatpush1.bf16.msra.mxu0 %v475
    %591 = vmatprep.subr.bf16.mxu0 0
    %592 = vmatpush1.bf16.msra.mxu0 %v476
    %593 = vmatprep.subr.bf16.mxu0 0
    %594 = vmatpush1.bf16.msra.mxu0 %v477
    %595 = vmatprep.subr.bf16.mxu0 0
    %596 = vmatpush1.bf16.msra.mxu0 %v478
    %597 = vmatprep.subr.bf16.mxu0 0
    %598 = vmatpush1.bf16.msra.mxu0 %v479
    %599 = vmatprep.subr.bf16.mxu0 0
    %600 = vmatpush1.bf16.msra.mxu0 %v480
    %601 = vmatprep.subr.bf16.mxu0 0
    %602 = vmatpush1.bf16.msra.mxu0 %v481
    %603 = vmatprep.subr.bf16.mxu0 0
    %604 = vmatpush1.bf16.msra.mxu0 %v482
    %605 = vmatprep.subr.bf16.mxu0 0
    %606 = vmatpush1.bf16.msra.mxu0 %v483
    %607 = vmatprep.subr.bf16.mxu0 0
    %608 = vmatpush1.bf16.msra.mxu0 %v484
    %609 = vmatprep.subr.bf16.mxu0 0
    %610 = vmatpush1.bf16.msra.mxu0 %v485
    %611 = vmatprep.subr.bf16.mxu0 0
    %612 = vmatpush1.bf16.msra.mxu0 %v486
    %613 = vmatprep.subr.bf16.mxu0 0
    %614 = vmatpush1.bf16.msra.mxu0 %v487
    %615 = vmatprep.subr.bf16.mxu0 0
    %616 = vmatpush1.bf16.msra.mxu0 %v488
    %617 = vmatprep.mubr.bf16.mxu0 %v237
    %618 = vmatmul.mubr.bf16.gmra.mrb[0].mxu0 %v236
    %v619 = vpop.f32.mrb[0].mxu0
    %v620 = vadd.f32 %v247, %v619
    %v621 = vpop.f32.mrb[0].mxu0
    %v622 = vpop.f32.mrb[0].mxu0
    %v623 = vpop.f32.mrb[0].mxu0
    %624 = vdwg.mxu0
    %625 = vmatprep.subr.bf16.mxu0 0
    %626 = vmatpush1.bf16.msra.mxu0 %v489
    %627 = vmatprep.subr.bf16.mxu0 0
    %628 = vmatpush1.bf16.msra.mxu0 %v490
    %629 = vmatprep.subr.bf16.mxu0 0
    %630 = vmatpush1.bf16.msra.mxu0 %v491
    %631 = vmatprep.subr.bf16.mxu0 0
    %632 = vmatpush1.bf16.msra.mxu0 %v492
    %633 = vmatprep.subr.bf16.mxu0 0
    %634 = vmatpush1.bf16.msra.mxu0 %v493
    %635 = vmatprep.subr.bf16.mxu0 0
    %636 = vmatpush1.bf16.msra.mxu0 %v494
    %637 = vmatprep.subr.bf16.mxu0 0
    %638 = vmatpush1.bf16.msra.mxu0 %v495
    %639 = vmatprep.subr.bf16.mxu0 0
    %640 = vmatpush1.bf16.msra.mxu0 %v496
    %641 = vmatprep.subr.bf16.mxu0 0
    %642 = vmatpush1.bf16.msra.mxu0 %v497
    %643 = vmatprep.subr.bf16.mxu0 0
    %644 = vmatpush1.bf16.msra.mxu0 %v498
    %645 = vmatprep.subr.bf16.mxu0 0
    %646 = vmatpush1.bf16.msra.mxu0 %v499
    %647 = vmatprep.subr.bf16.mxu0 0
    %648 = vmatpush1.bf16.msra.mxu0 %v500
    %649 = vmatprep.subr.bf16.mxu0 0
    %650 = vmatpush1.bf16.msra.mxu0 %v501
    %651 = vmatprep.subr.bf16.mxu0 0
    %652 = vmatpush1.bf16.msra.mxu0 %v502
    %653 = vmatprep.subr.bf16.mxu0 0
    %654 = vmatpush1.bf16.msra.mxu0 %v503
    %655 = vmatprep.subr.bf16.mxu0 0
    %656 = vmatpush1.bf16.msra.mxu0 %v504
    %657 = vmatprep.mubr.bf16.mxu0 %v239
    %658 = vmatmul.mubr.bf16.gmra.mrb[0].mxu0 %v238
    %v659 = vpop.f32.mrb[0].mxu0
    %v660 = vadd.f32 %v620, %v659
    %v661 = vpop.f32.mrb[0].mxu0
    %v662 = vpop.f32.mrb[0].mxu0
    %v663 = vpop.f32.mrb[0].mxu0
    %664 = vdwg.mxu0
    %665 = vmatprep.subr.bf16.mxu0 0
    %666 = vmatpush1.bf16.msra.mxu0 %v505
    %667 = vmatprep.subr.bf16.mxu0 0
    %668 = vmatpush1.bf16.msra.mxu0 %v506
    %669 = vmatprep.subr.bf16.mxu0 0
    %670 = vmatpush1.bf16.msra.mxu0 %v507
    %671 = vmatprep.subr.bf16.mxu0 0
    %672 = vmatpush1.bf16.msra.mxu0 %v508
    %673 = vmatprep.subr.bf16.mxu0 0
    %674 = vmatpush1.bf16.msra.mxu0 %v509
    %675 = vmatprep.subr.bf16.mxu0 0
    %676 = vmatpush1.bf16.msra.mxu0 %v510
    %677 = vmatprep.subr.bf16.mxu0 0
    %678 = vmatpush1.bf16.msra.mxu0 %v511
    %679 = vmatprep.subr.bf16.mxu0 0
    %680 = vmatpush1.bf16.msra.mxu0 %v512
    %681 = vmatprep.subr.bf16.mxu0 0
    %682 = vmatpush1.bf16.msra.mxu0 %v513
    %683 = vmatprep.subr.bf16.mxu0 0
    %684 = vmatpush1.bf16.msra.mxu0 %v514
    %685 = vmatprep.subr.bf16.mxu0 0
    %686 = vmatpush1.bf16.msra.mxu0 %v515
    %687 = vmatprep.subr.bf16.mxu0 0
    %688 = vmatpush1.bf16.msra.mxu0 %v516
    %689 = vmatprep.subr.bf16.mxu0 0
    %690 = vmatpush1.bf16.msra.mxu0 %v517
    %691 = vmatprep.subr.bf16.mxu0 0
    %692 = vmatpush1.bf16.msra.mxu0 %v518
    %693 = vmatprep.subr.bf16.mxu0 0
    %694 = vmatpush1.bf16.msra.mxu0 %v519
    %695 = vmatprep.subr.bf16.mxu0 0
    %696 = vmatpush1.bf16.msra.mxu0 %v520
    %697 = vmatprep.mubr.bf16.mxu0 %v241
    %698 = vmatmul.mubr.bf16.gmra.mrb[0].mxu0 %v240
    %v699 = vpop.f32.mrb[0].mxu0
    %v700 = vadd.f32 %v660, %v699
    %v701 = vpop.f32.mrb[0].mxu0
    %v702 = vpop.f32.mrb[0].mxu0
    %v703 = vpop.f32.mrb[0].mxu0
    %704 = vdwg.mxu0
    %705 = vmatprep.subr.bf16.mxu0 0
    %706 = vmatpush1.bf16.msra.mxu0 %v521
    %707 = vmatprep.subr.bf16.mxu0 0
    %708 = vmatpush1.bf16.msra.mxu0 %v522
    %709 = vmatprep.subr.bf16.mxu0 0
    %710 = vmatpush1.bf16.msra.mxu0 %v523
    %711 = vmatprep.subr.bf16.mxu0 0
    %712 = vmatpush1.bf16.msra.mxu0 %v524
    %713 = vmatprep.subr.bf16.mxu0 0
    %714 = vmatpush1.bf16.msra.mxu0 %v525
    %715 = vmatprep.subr.bf16.mxu0 0
    %716 = vmatpush1.bf16.msra.mxu0 %v526
    %717 = vmatprep.subr.bf16.mxu0 0
    %718 = vmatpush1.bf16.msra.mxu0 %v527
    %719 = vmatprep.subr.bf16.mxu0 0
    %720 = vmatpush1.bf16.msra.mxu0 %v528
    %721 = vmatprep.subr.bf16.mxu0 0
    %722 = vmatpush1.bf16.msra.mxu0 0
    %723 = vmatprep.subr.bf16.mxu0 0
    %724 = vmatpush1.bf16.msra.mxu0 0
    %725 = vmatprep.subr.bf16.mxu0 0
    %726 = vmatpush1.bf16.msra.mxu0 0
    %727 = vmatprep.subr.bf16.mxu0 0
    %728 = vmatpush1.bf16.msra.mxu0 0
    %729 = vmatprep.subr.bf16.mxu0 0
    %730 = vmatpush1.bf16.msra.mxu0 0
    %731 = vmatprep.subr.bf16.mxu0 0
    %732 = vmatpush1.bf16.msra.mxu0 0
    %733 = vmatprep.subr.bf16.mxu0 0
    %734 = vmatpush1.bf16.msra.mxu0 0
    %735 = vmatprep.subr.bf16.mxu0 0
    %736 = vmatpush1.bf16.msra.mxu0 0
    %737 = vmatprep.mubr.bf16.mxu0 0
    %738 = vmatmul.mubr.bf16.gmra.mrb[0].mxu0 %v242
    %v739 = vpop.f32.mrb[0].mxu0
    %v740 = vadd.f32 %v700, %v739
    %v741 = vpop.f32.mrb[0].mxu0
    %v742 = vpop.f32.mrb[0].mxu0
    %v743 = vpop.f32.mrb[0].mxu0
    %744 = vdwg.mxu0
    %v745 = vxor.u32 %v740, 2147483648
    %v746 = vmul.f32 %v745, 1.442695
    %v747 = vpow.pop %v746
    %v748 = vadd.f32 %v747, 1.0
    %v749 = vrcp.pop %v748
    %v750 = vmul.f32 1.0, %v749
    %v751 = vtanh.pop %v740
    %753 = vrot.lane.b32.xlu0 %v235, 32
    %v754 = vpop.permute.xlu0 %753
    %v756 = vmul.f32 %v750, %v754
    %758 = vrot.lane.b32.xlu0 %v751, 64
    %v759 = vpop.permute.xlu0 %758
    %v761 = vmul.f32 %v750, %v759
    %763 = vrot.lane.b32.xlu0 %v761, 32
    %v764 = vpop.permute.xlu0 %763
    %v766 = vadd.f32 %v756, %v764
    %v767 = vtanh.pop %v766
    %769 = vrot.lane.b32.xlu0 %v767, 64
    %v770 = vpop.permute.xlu0 %769
    %v772 = vmul.f32 %v750, %v770
    %774 = vrot.lane.b32.xlu0 %v772, 32
    %v775 = vpop.permute.xlu0 %774
    %vm777 = vcmask 261120
    %778 = vst.msk [vmem:[%s10] sm:$0xff] %vm777, %v775
    %vm779 = vcmask 1047808
    %780 = vst.msk [vmem:[%s10] sm:$0xff] %vm779, 0.0
    %782 = vrot.lane.b32.xlu0 %v766, 96
    %v783 = vpop.permute.xlu0 %782
    %785 = vst.msk [vmem:[%s11] sm:$0xff] %vm777, %v783
    %786 = vst.msk [vmem:[%s11] sm:$0xff] %vm779, 0.0
    %787 = vst.msk [vmem:[#allocation3] sm:$0xff] %vm777, %v775
    %s788 = scalar_lea.vmem %s2, 8
    %v789 = vld [vmem:[%s788] sm:$0xff]
    %791 = vrot.lane.b32.xlu0 %v789, 32
    %v792 = vpop.permute.xlu0 %791
    %vm794 = vcmask 523520
    %795 = vst.msk [vmem:[#allocation3] sm:$0xff] %vm794, %v792
    %v796 = vld [vmem:[#allocation3] sm:$0xff]
    %v797 = vld [vmem:[#allocation9] sm:$0xf]
    %v798 = vld [vmem:[#allocation9 + $0x4] sm:$0xf]
    %v799 = vld [vmem:[#allocation9 + $0x8] sm:$0xf]
    %v800 = vld [vmem:[#allocation9 + $0xc] sm:$0xf]
    %v801 = vld [vmem:[#allocation9 + $0x10] sm:$0xf]
    %v802 = vld [vmem:[#allocation9 + $0x14] sm:$0xf]
    %v803 = vld [vmem:[#allocation9 + $0x18] sm:$0xf]
    %v804 = vld [vmem:[#allocation9 + $0x1c] sm:$0xf]
    %v805 = vld [vmem:[#allocation9 + $0x20] sm:$0xf]
    %v806 = vld [vmem:[#allocation9 + $0x24] sm:$0xf]
    %v807 = vld [vmem:[#allocation9 + $0x28] sm:$0xf]
    %v808 = vld [vmem:[#allocation9 + $0x2c] sm:$0xf]
    %v809 = vld [vmem:[#allocation9 + $0x30] sm:$0xf]
    %v810 = vld [vmem:[#allocation9 + $0x34] sm:$0xf]
    %v811 = vld [vmem:[#allocation9 + $0x38] sm:$0xf]
    %v812 = vld [vmem:[#allocation9 + $0x3c] sm:$0xf]
    %s813 = scalar_lea.vmem %s6, 1
    %v814 = vld [vmem:[%s813] sm:$0x1]
    %s815 = scalar_lea.vmem %s3, 8
    %v816 = vld [vmem:[%s815] sm:$0xff]
    %v817 = vpack.c.bf16 %v796, %v796
    %v819 = vlaneseq
    %v820 = vshrl.u32 %v819, 7
    %v821 = vsub.s32 0, %v820
    %v822 = vrot.slane %v814, %v821
    %v840 = vunpack.c.l.b16 %v797
    %v841 = vunpack.c.l.b16 %v798
    %v842 = vunpack.c.l.b16 %v799
    %v843 = vunpack.c.l.b16 %v800
    %v844 = vunpack.c.l.b16 %v801
    %v845 = vunpack.c.l.b16 %v802
    %v846 = vunpack.c.l.b16 %v803
    %v847 = vunpack.c.l.b16 %v804
    %v848 = vunpack.c.l.b16 %v805
    %v849 = vunpack.c.l.b16 %v806
    %v850 = vunpack.c.l.b16 %v807
    %v851 = vunpack.c.l.b16 %v808
    %v852 = vunpack.c.l.b16 %v809
    %v853 = vunpack.c.l.b16 %v810
    %v854 = vunpack.c.l.b16 %v811
    %v855 = vunpack.c.l.b16 %v812
    %v856 = vpack.c.b16 %v841, %v840
    %v857 = vpack.c.b16 %v843, %v842
    %v858 = vpack.c.b16 %v845, %v844
    %v859 = vpack.c.b16 %v847, %v846
    %v860 = vpack.c.b16 %v849, %v848
    %v861 = vpack.c.b16 %v851, %v850
    %v862 = vpack.c.b16 %v853, %v852
    %v863 = vpack.c.b16 %v855, %v854
    %872 = vmatprep.subr.bf16.mxu0 0
    %873 = vmatpush1.bf16.msra.mxu0 %v856
    %874 = vmatprep.subr.bf16.mxu0 0
    %875 = vmatpush1.bf16.msra.mxu0 %v857
    %876 = vmatprep.subr.bf16.mxu0 0
    %877 = vmatpush1.bf16.msra.mxu0 %v858
    %878 = vmatprep.subr.bf16.mxu0 0
    %879 = vmatpush1.bf16.msra.mxu0 %v859
    %880 = vmatprep.subr.bf16.mxu0 0
    %881 = vmatpush1.bf16.msra.mxu0 %v860
    %882 = vmatprep.subr.bf16.mxu0 0
    %883 = vmatpush1.bf16.msra.mxu0 %v861
    %884 = vmatprep.subr.bf16.mxu0 0
    %885 = vmatpush1.bf16.msra.mxu0 %v862
    %886 = vmatprep.subr.bf16.mxu0 0
    %887 = vmatpush1.bf16.msra.mxu0 %v863
    %888 = vmatprep.subr.bf16.mxu0 0
    %889 = vmatpush1.bf16.msra.mxu0 0
    %890 = vmatprep.subr.bf16.mxu0 0
    %891 = vmatpush1.bf16.msra.mxu0 0
    %892 = vmatprep.subr.bf16.mxu0 0
    %893 = vmatpush1.bf16.msra.mxu0 0
    %894 = vmatprep.subr.bf16.mxu0 0
    %895 = vmatpush1.bf16.msra.mxu0 0
    %896 = vmatprep.subr.bf16.mxu0 0
    %897 = vmatpush1.bf16.msra.mxu0 0
    %898 = vmatprep.subr.bf16.mxu0 0
    %899 = vmatpush1.bf16.msra.mxu0 0
    %900 = vmatprep.subr.bf16.mxu0 0
    %901 = vmatpush1.bf16.msra.mxu0 0
    %902 = vmatprep.subr.bf16.mxu0 0
    %903 = vmatpush1.bf16.msra.mxu0 0
    %904 = vmatprep.mubr.bf16.mxu0 0
    %905 = vmatmul.mubr.bf16.gmra.mrb[0].mxu0 %v817
    %v906 = vpop.f32.mrb[0].mxu0
    %v907 = vadd.f32 %v822, %v906
    %v908 = vpop.f32.mrb[0].mxu0
    %v909 = vpop.f32.mrb[0].mxu0
    %v910 = vpop.f32.mrb[0].mxu0
    %911 = vdwg.mxu0
    %v912 = vxor.u32 %v907, 2147483648
    %v913 = vmul.f32 %v912, 1.442695
    %v914 = vpow.pop %v913
    %v915 = vadd.f32 %v914, 1.0
    %v916 = vrcp.pop %v915
    %v917 = vmul.f32 1.0, %v916
    %v918 = vtanh.pop %v907
    %920 = vrot.lane.b32.xlu0 %v816, 32
    %v921 = vpop.permute.xlu0 %920
    %v923 = vmul.f32 %v917, %v921
    %925 = vrot.lane.b32.xlu0 %v918, 64
    %v926 = vpop.permute.xlu0 %925
    %v928 = vmul.f32 %v917, %v926
    %930 = vrot.lane.b32.xlu0 %v928, 32
    %v931 = vpop.permute.xlu0 %930
    %v933 = vadd.f32 %v923, %v931
    %v934 = vtanh.pop %v933
    %936 = vrot.lane.b32.xlu0 %v934, 64
    %v937 = vpop.permute.xlu0 %936
    %v939 = vmul.f32 %v917, %v937
    %941 = vrot.lane.b32.xlu0 %v939, 32
    %v942 = vpop.permute.xlu0 %941
    %s944 = scalar_lea.vmem %s10, 8
    %945 = vst.msk [vmem:[%s944] sm:$0xff] %vm777, %v942
    %946 = vst.msk [vmem:[%s944] sm:$0xff] %vm779, 0.0
    %948 = vrot.lane.b32.xlu0 %v933, 96
    %v949 = vpop.permute.xlu0 %948
    %s951 = scalar_lea.vmem %s11, 8
    %952 = vst.msk [vmem:[%s951] sm:$0xff] %vm777, %v949
    %953 = vst.msk [vmem:[%s951] sm:$0xff] %vm779, 0.0
    %v954 = vpack.c.bf16 %v939, %v939
    %v955 = vld [vmem:[%s7] sm:$0xf]
    %v956 = vld [vmem:[%s7 + $0x4] sm:$0xf]
    %v957 = vld [vmem:[%s7 + $0x8] sm:$0xf]
    %v958 = vld [vmem:[%s7 + $0xc] sm:$0xf]
    %v959 = vld [vmem:[%s8] sm:$0x1]
    %v961 = vlaneseq
    %v962 = vshrl.u32 %v961, 7
    %v963 = vsub.s32 0, %v962
    %v964 = vrot.slane %v959, %v963
    %967 = vrot.lane.b32.xlu0 %v954, 32
    %v968 = vpop.permute.xlu0 %967
    %v973 = vunpack.c.l.b16 %v955
    %v974 = vunpack.c.l.b16 %v956
    %v975 = vunpack.c.l.b16 %v957
    %v976 = vunpack.c.l.b16 %v958
    %v977 = vpack.c.b16 %v974, %v973
    %v978 = vpack.c.b16 %v976, %v975
    %v982 = vsel %vm777, %v968, 0
    %984 = vmatprep.subr.bf16.mxu0 0
    %985 = vmatpush1.bf16.msra.mxu0 %v977
    %986 = vmatprep.subr.bf16.mxu0 0
    %987 = vmatpush1.bf16.msra.mxu0 %v978
    %988 = vmatprep.subr.bf16.mxu0 0
    %989 = vmatpush1.bf16.msra.mxu0 0
    %990 = vmatprep.subr.bf16.mxu0 0
    %991 = vmatpush1.bf16.msra.mxu0 0
    %992 = vmatprep.subr.bf16.mxu0 0
    %993 = vmatpush1.bf16.msra.mxu0 0
    %994 = vmatprep.subr.bf16.mxu0 0
    %995 = vmatpush1.bf16.msra.mxu0 0
    %996 = vmatprep.subr.bf16.mxu0 0
    %997 = vmatpush1.bf16.msra.mxu0 0
    %998 = vmatprep.subr.bf16.mxu0 0
    %999 = vmatpush1.bf16.msra.mxu0 0
    %1000 = vmatprep.subr.bf16.mxu0 0
    %1001 = vmatpush1.bf16.msra.mxu0 0
    %1002 = vmatprep.subr.bf16.mxu0 0
    %1003 = vmatpush1.bf16.msra.mxu0 0
    %1004 = vmatprep.subr.bf16.mxu0 0
    %1005 = vmatpush1.bf16.msra.mxu0 0
    %1006 = vmatprep.subr.bf16.mxu0 0
    %1007 = vmatpush1.bf16.msra.mxu0 0
    %1008 = vmatprep.subr.bf16.mxu0 0
    %1009 = vmatpush1.bf16.msra.mxu0 0
    %1010 = vmatprep.subr.bf16.mxu0 0
    %1011 = vmatpush1.bf16.msra.mxu0 0
    %1012 = vmatprep.subr.bf16.mxu0 0
    %1013 = vmatpush1.bf16.msra.mxu0 0
    %1014 = vmatprep.subr.bf16.mxu0 0
    %1015 = vmatpush1.bf16.msra.mxu0 0
    %1016 = vmatprep.mubr.bf16.mxu0 0
    %1017 = vmatmul.mubr.bf16.gmra.mrb[0].mxu0 %v982
    %v1018 = vpop.f32.mrb[0].mxu0
    %v1019 = vadd.f32 %v964, %v1018
    %v1020 = vpop.f32.mrb[0].mxu0
    %v1021 = vpop.f32.mrb[0].mxu0
    %v1022 = vpop.f32.mrb[0].mxu0
    %1023 = vdwg.mxu0
    %1024 = vst [vmem:[%s9] sm:$0xff] %v1019
    // Predicated region
    $region46: #{step_decoder_forward.1} parent=1 // pred_check
      _
    $region47: #{step_decoder_forward.1} parent=1 // pred_check_branch
      %1026 = sbr.rel (0) target = $region49
    $region48: #{step_decoder_forward.1} parent=1 // pred_region
      _
    $region49: #{step_decoder_forward.1} parent=1 // pred_fallthru
      _
    // Predicated region
    $region50: #{step_decoder_forward.1} parent=1 // pred_check
      _
    $region51: #{step_decoder_forward.1} parent=1 // pred_check_branch
      %1028 = sbr.rel (0) target = $region53
    $region52: #{step_decoder_forward.1} parent=1 // pred_region
      _
    $region53: #{step_decoder_forward.1} parent=1 // pred_fallthru
      _
    // Predicated region
    $region54: #{step_decoder_forward.1} parent=1 // pred_check
      _
    $region55: #{step_decoder_forward.1} parent=1 // pred_check_branch
      %1030 = sbr.rel (0) target = $region57
    $region56: #{step_decoder_forward.1} parent=1 // pred_region
      _
    $region57: #{step_decoder_forward.1} parent=1 // pred_fallthru
      _
    // Predicated region
    $region58: #{step_decoder_forward.1} parent=1 // pred_check
      _
    $region59: #{step_decoder_forward.1} parent=1 // pred_check_branch
      %1032 = sbr.rel (0) target = $region61
    $region60: #{step_decoder_forward.1} parent=1 // pred_region
      _
    $region61: #{step_decoder_forward.1} parent=1 // pred_fallthru
      _
    // Predicated region
    $region62: #{step_decoder_forward.1} parent=1 // pred_check
      _
    $region63: #{step_decoder_forward.1} parent=1 // pred_check_branch
      %1034 = sbr.rel (0) target = $region65
    $region64: #{step_decoder_forward.1} parent=1 // pred_region
      _
    $region65: #{step_decoder_forward.1} parent=1 // pred_fallthru
      _
    // Predicated region
    $region66: #{step_decoder_forward.1} parent=1 // pred_check
      _
    $region67: #{step_decoder_forward.1} parent=1 // pred_check_branch
      %1036 = sbr.rel (0) target = $region69
    $region68: #{step_decoder_forward.1} parent=1 // pred_region
      _
    $region69: #{step_decoder_forward.1} parent=1 // pred_fallthru
      _
    %1037 = vsyncpa [#allocation6], 1
    %1038 = vsyncpa [#allocation10], 1
    %1039 = vsyncpa [#allocation7], 1
  %1040 = vsyncmov [#allocation4]
  %s1041 = vpop.sfrf %1040
  %p1042 = scmp.eq.s32.totalorder %s1041, 0
  %p1043 = pneg %p1042
  %1045 = shalt.err (%p1043)

</llo_original>
